<compile_context>
chip_gen: v6e
topology: v6e:2x2x1
jax: 0.10.0
libtpu: 0.0.40
codegen_flags: <defaults>
</compile_context>

<pallas_src>
import jax
import jax.numpy as jnp
from jax.experimental import pallas as pl
from jax.experimental.pallas import tpu as pltpu


# ---------------------------------------------------------------------------
# Helpers
# ---------------------------------------------------------------------------
def _round_up(x, m):
    return (x + m - 1) // m * m


def _pick_hidden_chunk(hp):
    """Largest lane-aligned chunk that yields >=2 chunks when Hp allows it."""
    if hp <= 128:
        return hp
    for cand in (512, 256, 128):
        if hp % cand == 0 and hp // cand >= 2:
            return cand
    return 128


def _batch_tile(batch):
    # Full batch when small (block dim == full dim satisfies the (8,128) rule);
    # 256-row tiles otherwise (native for the 256x256 MXU, fits v7x's 64 MiB
    # VMEM; on v5e/v6e a 512-row tile would also fit and amortizes per-step
    # overhead further).
    return batch if batch <= 256 else 256


def _vmem_limit_bytes(tb, ip, hp, hc, act_bytes):
    # Conservative estimate (weights counted double-buffered) + 2x headroom,
    # clamped to [32 MiB, 64 MiB] so it is valid on every generation
    # (v5e/v6e 128 MiB physical, v7x 64 MiB physical).
    acts = 2 * tb * (ip + hp) * act_bytes + 2 * tb * hc * 4
    wts = 2 * ((ip + hp) * 4 * hc * act_bytes + 4 * hc * 4)
    outs = 2 * 2 * tb * hc * 4
    scratch = 8 * tb * 4 * hc  # f32 gate temporaries
    est = acts + wts + outs + scratch
    return int(min(max(2 * est, 32 << 20), 64 << 20))


# ---------------------------------------------------------------------------
# Kernel
# ---------------------------------------------------------------------------
def lstm_cell_kernel(x_ref, h_ref, c_ref, wih_ref, whh_ref, b_ref,
                     h_out_ref, c_out_ref):
    """One (batch tile, hidden chunk) of the LSTM cell.

    x_ref   : (TB, Ip)     input features, bf16
    h_ref   : (TB, Hp)     previous hidden state (full hidden dim), bf16
    c_ref   : (TB, Hc)     previous cell state for this chunk, f32
    wih_ref : (Ip, 4*Hc)   packed W_ih columns for this chunk, bf16
    whh_ref : (Hp, 4*Hc)   packed W_hh columns for this chunk, bf16
    b_ref   : (1, 4*Hc)    folded bias (b_ih + b_hh) for this chunk, f32
    """
    hc = h_out_ref.shape[1]

    # Two MXU matmuls, f32 accumulation.  Columns are laid out [i | f | g | o]
    # within the chunk, each Hc wide (lane-aligned because Hc % 128 == 0).
    gates = (
        jnp.dot(x_ref[...], wih_ref[...], preferred_element_type=jnp.float32)
        + jnp.dot(h_ref[...], whh_ref[...], preferred_element_type=jnp.float32)
        + b_ref[...]
    )

    i_t = jax.nn.sigmoid(gates[:, 0 * hc:1 * hc])
    f_t = jax.nn.sigmoid(gates[:, 1 * hc:2 * hc])
    g_t = jnp.tanh(gates[:, 2 * hc:3 * hc])
    o_t = jax.nn.sigmoid(gates[:, 3 * hc:4 * hc])

    c_prev = c_ref[...]                      # f32
    c_next = f_t * c_prev + i_t * g_t        # f32 cell-state update
    h_next = o_t * jnp.tanh(c_next)

    h_out_ref[...] = h_next.astype(h_out_ref.dtype)
    c_out_ref[...] = c_next.astype(c_out_ref.dtype)


# ---------------------------------------------------------------------------
# Parameter packing (call ONCE per parameter set, not per step)
# ---------------------------------------------------------------------------
def pack_lstm_params(w_ih, b_ih, w_hh, b_hh, compute_dtype=jnp.bfloat16,
                     hidden_chunk=None):
    """Pack the two nn.Linear weights into MXU-ready, lane-aligned matrices.

    Hidden dim is zero-padded to Hp (multiple of 128), input dim to Ip
    (multiple of 128).  Columns are gate/chunk interleaved so that column
    block j (width 4*Hc) holds [i | f | g | o] for hidden units
    [j*Hc, (j+1)*Hc) -- this lets a grid axis tile the weight columns.
    """
    four_h, input_size = w_ih.shape
    hidden_size = four_h // 4
    hp = _round_up(hidden_size, 128)
    ip = _round_up(input_size, 128)
    hc = hidden_chunk if hidden_chunk is not None else _pick_hidden_chunk(hp)
    assert hp % hc == 0 and hc % 128 == 0
    n_chunks = hp // hc

    def pack_w(w, k_in, k_pad):
        # (4H, k_in) -> (k_pad, n_chunks*4*Hc), gate/chunk interleaved columns.
        w = w.reshape(4, hidden_size, k_in).astype(jnp.float32)
        w = jnp.pad(w, ((0, 0), (0, hp - hidden_size), (0, k_pad - k_in)))
        w = w.reshape(4, n_chunks, hc, k_pad)
        w = jnp.transpose(w, (1, 0, 2, 3)).reshape(n_chunks * 4 * hc, k_pad)
        return jnp.transpose(w).astype(compute_dtype)

    w_ih_p = pack_w(w_ih, input_size, ip)          # (Ip, n_chunks*4*Hc)
    w_hh_p = pack_w(w_hh, hidden_size, hp)         # (Hp, n_chunks*4*Hc)

    bias = (b_ih.astype(jnp.float32) + b_hh.astype(jnp.float32))
    bias = bias.reshape(4, hidden_size)
    bias = jnp.pad(bias, ((0, 0), (0, hp - hidden_size)))
    bias = bias.reshape(4, n_chunks, hc)
    bias = jnp.transpose(bias, (1, 0, 2)).reshape(1, n_chunks * 4 * hc)

    meta = dict(input_size=input_size, hidden_size=hidden_size,
                ip=ip, hp=hp, hc=hc, n_chunks=n_chunks,
                compute_dtype=compute_dtype)
    return w_ih_p, w_hh_p, bias, meta


# ---------------------------------------------------------------------------
# Forward wrappers
# ---------------------------------------------------------------------------
def lstm_cell_forward_packed(x, h_prev, c_prev, w_ih_p, w_hh_p, bias, meta):
    """
    x      : (B, input_size)   h_prev, c_prev : (B, hidden_size)
    returns (h_next, c_next), each (B, hidden_size) in float32.
    """
    batch = x.shape[0]
    hidden = meta["hidden_size"]
    ip, hp, hc, n_chunks = meta["ip"], meta["hp"], meta["hc"], meta["n_chunks"]
    cdt = meta["compute_dtype"]
    act_bytes = jnp.dtype(cdt).itemsize

    tb = _batch_tile(batch)
    b_pad = pl.cdiv(batch, tb) * tb

    def pad2(a, rows, cols, dtype):
        a = a.astype(dtype)
        return jnp.pad(a, ((0, rows - a.shape[0]), (0, cols - a.shape[1])))

    x_p = pad2(x, b_pad, ip, cdt)                      # activations -> bf16
    h_p = pad2(h_prev, b_pad, hp, cdt)
    c_p = pad2(c_prev, b_pad, hp, jnp.float32)         # cell state forced f32

    grid = (b_pad // tb, n_chunks)
    vmem_limit = _vmem_limit_bytes(tb, ip, hp, hc, act_bytes)

    def build_call(single_buffer_weights):
        w_mode = ({"pipeline_mode": pl.Buffered(1)}
                  if single_buffer_weights else {})
        in_specs = [
            pl.BlockSpec((tb, ip), lambda i, j: (i, 0)),            # x
            pl.BlockSpec((tb, hp), lambda i, j: (i, 0)),            # h_prev (full)
            pl.BlockSpec((tb, hc), lambda i, j: (i, j)),            # c_prev chunk
            pl.BlockSpec((ip, 4 * hc), lambda i, j: (0, j), **w_mode),  # W_ih cols
            pl.BlockSpec((hp, 4 * hc), lambda i, j: (0, j), **w_mode),  # W_hh cols
            pl.BlockSpec((1, 4 * hc), lambda i, j: (0, j), **w_mode),   # bias
        ]
        out_specs = (
            pl.BlockSpec((tb, hc), lambda i, j: (i, j)),
            pl.BlockSpec((tb, hc), lambda i, j: (i, j)),
        )
        return pl.pallas_call(
            lstm_cell_kernel,
            out_shape=(
                jax.ShapeDtypeStruct((b_pad, hp), jnp.float32),
                jax.ShapeDtypeStruct((b_pad, hp), jnp.float32),
            ),
            grid=grid,
            in_specs=in_specs,
            out_specs=out_specs,
            compiler_params=pltpu.CompilerParams(
                dimension_semantics=("parallel", "parallel"),
                vmem_limit_bytes=vmem_limit,
            ),
        )

    # Buffered(1) only when the weight index_maps are constant (single chunk);
    # with multiple chunks the default double-buffer prefetches the next
    # chunk's weight columns.
    single_buf = n_chunks == 1
    try:
        h_pad, c_pad = build_call(single_buf)(x_p, h_p, c_p,
                                              w_ih_p, w_hh_p, bias)
    except Exception:
        if not single_buf:
            raise
        # Safety net: fall back to default buffering if Buffered(1) is not
        # supported by the installed jax version.
        h_pad, c_pad = build_call(False)(x_p, h_p, c_p, w_ih_p, w_hh_p, bias)

    return h_pad[:batch, :hidden], c_pad[:batch, :hidden]


def lstm_cell_forward(x, w_ih, b_ih, w_hh, b_hh, hidden_state_tuple=None):
    """Convenience wrapper matching the nn.Module call (packs per call)."""
    hidden_size = w_hh.shape[1]
    if hidden_state_tuple is None:
        z = jnp.zeros((x.shape[0], hidden_size), jnp.float32)
        hidden_state_tuple = (z, z)
    h_prev, c_prev = hidden_state_tuple
    packed = pack_lstm_params(w_ih, b_ih, w_hh, b_hh)
    return lstm_cell_forward_packed(x, h_prev, c_prev, *packed)


# ---------------------------------------------------------------------------
# Init + references
# ---------------------------------------------------------------------------
def init_params(key, input_size, hidden_size):
    """Uniform(-1/sqrt(H), 1/sqrt(H)) init, mirroring reset_parameters."""
    std = 1.0 / jnp.sqrt(jnp.float32(hidden_size))
    k1, k2, k3, k4 = jax.random.split(key, 4)
    w_ih = jax.random.uniform(k1, (4 * hidden_size, input_size),
                              jnp.float32, -std, std)
    b_ih = jax.random.uniform(k2, (4 * hidden_size,), jnp.float32, -std, std)
    w_hh = jax.random.uniform(k3, (4 * hidden_size, hidden_size),
                              jnp.float32, -std, std)
    b_hh = jax.random.uniform(k4, (4 * hidden_size,), jnp.float32, -std, std)
    return w_ih, b_ih, w_hh, b_hh


def _gates_to_hc(gates, c_prev, hidden):
    i_t = jax.nn.sigmoid(gates[:, 0 * hidden:1 * hidden])
    f_t = jax.nn.sigmoid(gates[:, 1 * hidden:2 * hidden])
    g_t = jnp.tanh(gates[:, 2 * hidden:3 * hidden])
    o_t = jax.nn.sigmoid(gates[:, 3 * hidden:4 * hidden])
    c_next = f_t * c_prev + i_t * g_t
    h_next = o_t * jnp.tanh(c_next)
    return h_next, c_next


def reference_forward_f32(x, h_prev, c_prev, w_ih, b_ih, w_hh, b_hh):
    """Pure-f32 JAX transcription of the PyTorch forward."""
    gates = x @ w_ih.T + b_ih + h_prev @ w_hh.T + b_hh
    return _gates_to_hc(gates, c_prev, h_prev.shape[1])


def reference_forward_mixed(x, h_prev, c_prev, w_ih, b_ih, w_hh, b_hh,
                            compute_dtype=jnp.bfloat16):
    """Reference mirroring the kernel's bf16-matmul / f32-accumulate path."""
    gates = (jnp.dot(x.astype(compute_dtype), w_ih.T.astype(compute_dtype),
                     preferred_element_type=jnp.float32)
             + jnp.dot(h_prev.astype(compute_dtype),
                       w_hh.T.astype(compute_dtype),
                       preferred_element_type=jnp.float32)
             + b_ih + b_hh)
    return _gates_to_hc(gates, c_prev.astype(jnp.float32), h_prev.shape[1])


# ---------------------------------------------------------------------------
# Demo / correctness check
# ---------------------------------------------------------------------------
if __name__ == "__main__":
    batch = 2
    input_size = 16
    hidden_size = 32

    key = jax.random.PRNGKey(0)
    k_params, k_x, k_h, k_c = jax.random.split(key, 4)

    w_ih, b_ih, w_hh, b_hh = init_params(k_params, input_size, hidden_size)

    x = jax.random.normal(k_x, (batch, input_size), jnp.float32)
    h_prev = jax.random.normal(k_h, (batch, hidden_size), jnp.float32)
    c_prev = jax.random.normal(k_c, (batch, hidden_size), jnp.float32)

    # Pack weights once, then run the cell.
    packed = pack_lstm_params(w_ih, b_ih, w_hh, b_hh)
    h_next, c_next = lstm_cell_forward_packed(x, h_prev, c_prev, *packed)
    jax.block_until_ready((h_next, c_next))

    assert h_next.shape == (batch, hidden_size)
    assert c_next.shape == (batch, hidden_size)

    # Check 1: reference with the same bf16-matmul / f32-accumulate path.
    h_mref, c_mref = reference_forward_mixed(x, h_prev, c_prev,
                                             w_ih, b_ih, w_hh, b_hh)
    assert jnp.allclose(h_next, h_mref, atol=2e-3, rtol=2e-3), "h mismatch (mixed ref)"
    assert jnp.allclose(c_next, c_mref, atol=2e-3, rtol=2e-3), "c mismatch (mixed ref)"

    # Check 2: pure-f32 PyTorch-semantics reference (bf16 tolerance).
    h_ref, c_ref = reference_forward_f32(x, h_prev, c_prev,
                                         w_ih, b_ih, w_hh, b_hh)
    assert jnp.allclose(h_next, h_ref, atol=3e-2), "h mismatch (f32 ref)"
    assert jnp.allclose(c_next, c_ref, atol=3e-2), "c mismatch (f32 ref)"

    print("KERNEL_OK")
</pallas_src>

<mosaic_0001>
module attributes {stable_mosaic.version = 11 : i64} {
  func.func @lstm_cell_kernel(%arg0: i32, %arg1: i32, %arg2: memref<2x128xbf16, #tpu.memory_space<vmem>>, %arg3: memref<2x128xbf16, #tpu.memory_space<vmem>>, %arg4: memref<2x128xf32, #tpu.memory_space<vmem>>, %arg5: memref<128x512xbf16, #tpu.memory_space<vmem>>, %arg6: memref<128x512xbf16, #tpu.memory_space<vmem>>, %arg7: memref<1x512xf32, #tpu.memory_space<vmem>>, %arg8: memref<2x128xf32, #tpu.memory_space<vmem>>, %arg9: memref<2x128xf32, #tpu.memory_space<vmem>>) attributes {dimension_semantics = [#tpu.dimension_semantics<parallel>, #tpu.dimension_semantics<parallel>], iteration_bounds = array<i64: 1, 1>, scalar_prefetch = 0 : i64, scratch_operands = 0 : i64, tpu.core_type = #tpu.core_type<tc>, window_params = [{transform_indices = @transform_0, window_bounds = array<i64: 2, 128>}, {transform_indices = @transform_1, window_bounds = array<i64: 2, 128>}, {transform_indices = @transform_2, window_bounds = array<i64: 2, 128>}, {pipeline_mode = #tpu.pipeline_mode<synchronous>, transform_indices = @transform_3, window_bounds = array<i64: 128, 512>}, {pipeline_mode = #tpu.pipeline_mode<synchronous>, transform_indices = @transform_4, window_bounds = array<i64: 128, 512>}, {pipeline_mode = #tpu.pipeline_mode<synchronous>, transform_indices = @transform_5, window_bounds = array<i64: 1, 512>}, {transform_indices = @transform_6, window_bounds = array<i64: 2, 128>}, {transform_indices = @transform_7, window_bounds = array<i64: 2, 128>}]} {
    %c0 = arith.constant 0 : index
    %c0_0 = arith.constant 0 : index
    %0 = vector.load %arg2[%c0, %c0_0] : memref<2x128xbf16, #tpu.memory_space<vmem>>, vector<2x128xbf16>
    %c0_1 = arith.constant 0 : index
    %c0_2 = arith.constant 0 : index
    %1 = vector.load %arg5[%c0_1, %c0_2] : memref<128x512xbf16, #tpu.memory_space<vmem>>, vector<128x512xbf16>
    %cst = arith.constant dense<0.000000e+00> : vector<2x512xf32>
    %2 = tpu.matmul %0, %1, %cst {dimension_numbers = #tpu.dot_dimension_numbers<[1], [0], [0], [1], [0, 0, 1, 1], [], []>} : vector<2x128xbf16>, vector<128x512xbf16>, vector<2x512xf32> -> vector<2x512xf32>
    %c0_3 = arith.constant 0 : index
    %c0_4 = arith.constant 0 : index
    %3 = vector.load %arg3[%c0_3, %c0_4] : memref<2x128xbf16, #tpu.memory_space<vmem>>, vector<2x128xbf16>
    %c0_5 = arith.constant 0 : index
    %c0_6 = arith.constant 0 : index
    %4 = vector.load %arg6[%c0_5, %c0_6] : memref<128x512xbf16, #tpu.memory_space<vmem>>, vector<128x512xbf16>
    %cst_7 = arith.constant dense<0.000000e+00> : vector<2x512xf32>
    %5 = tpu.matmul %3, %4, %cst_7 {dimension_numbers = #tpu.dot_dimension_numbers<[1], [0], [0], [1], [0, 0, 1, 1], [], []>} : vector<2x128xbf16>, vector<128x512xbf16>, vector<2x512xf32> -> vector<2x512xf32>
    %6 = arith.addf %2, %5 : vector<2x512xf32>
    %c0_8 = arith.constant 0 : index
    %c0_9 = arith.constant 0 : index
    %7 = vector.load %arg7[%c0_8, %c0_9] : memref<1x512xf32, #tpu.memory_space<vmem>>, vector<1x512xf32>
    %8 = vector.broadcast %7 : vector<1x512xf32> to vector<2x512xf32>
    %9 = arith.addf %6, %8 : vector<2x512xf32>
    %10 = vector.extract_strided_slice %9 {offsets = [0, 0], sizes = [2, 128], strides = [1, 1]} : vector<2x512xf32> to vector<2x128xf32>
    %11 = arith.negf %10 : vector<2x128xf32>
    %12 = math.exp %11 : vector<2x128xf32>
    %cst_10 = arith.constant 1.000000e+00 : f32
    %13 = vector.broadcast %cst_10 : f32 to vector<2x128xf32>
    %14 = arith.addf %13, %12 : vector<2x128xf32>
    %15 = arith.divf %13, %14 : vector<2x128xf32>
    %16 = vector.extract_strided_slice %9 {offsets = [0, 128], sizes = [2, 128], strides = [1, 1]} : vector<2x512xf32> to vector<2x128xf32>
    %17 = arith.negf %16 : vector<2x128xf32>
    %18 = math.exp %17 : vector<2x128xf32>
    %cst_11 = arith.constant 1.000000e+00 : f32
    %19 = vector.broadcast %cst_11 : f32 to vector<2x128xf32>
    %20 = arith.addf %19, %18 : vector<2x128xf32>
    %21 = arith.divf %19, %20 : vector<2x128xf32>
    %22 = vector.extract_strided_slice %9 {offsets = [0, 256], sizes = [2, 128], strides = [1, 1]} : vector<2x512xf32> to vector<2x128xf32>
    %23 = math.tanh %22 : vector<2x128xf32>
    %24 = vector.extract_strided_slice %9 {offsets = [0, 384], sizes = [2, 128], strides = [1, 1]} : vector<2x512xf32> to vector<2x128xf32>
    %25 = arith.negf %24 : vector<2x128xf32>
    %26 = math.exp %25 : vector<2x128xf32>
    %cst_12 = arith.constant 1.000000e+00 : f32
    %27 = vector.broadcast %cst_12 : f32 to vector<2x128xf32>
    %28 = arith.addf %27, %26 : vector<2x128xf32>
    %29 = arith.divf %27, %28 : vector<2x128xf32>
    %c0_13 = arith.constant 0 : index
    %c0_14 = arith.constant 0 : index
    %30 = vector.load %arg4[%c0_13, %c0_14] : memref<2x128xf32, #tpu.memory_space<vmem>>, vector<2x128xf32>
    %31 = arith.mulf %21, %30 : vector<2x128xf32>
    %32 = arith.mulf %15, %23 : vector<2x128xf32>
    %33 = arith.addf %31, %32 : vector<2x128xf32>
    %34 = math.tanh %33 : vector<2x128xf32>
    %35 = arith.mulf %29, %34 : vector<2x128xf32>
    %c0_15 = arith.constant 0 : index
    %c0_16 = arith.constant 0 : index
    %36 = vector.load %arg8[%c0_15, %c0_16] : memref<2x128xf32, #tpu.memory_space<vmem>>, vector<2x128xf32>
    tpu.vector_store %arg8[%c0_15, %c0_16], %35 {strides = array<i32>} : memref<2x128xf32, #tpu.memory_space<vmem>>, vector<2x128xf32>,
    %c0_17 = arith.constant 0 : index
    %c0_18 = arith.constant 0 : index
    %37 = vector.load %arg9[%c0_17, %c0_18] : memref<2x128xf32, #tpu.memory_space<vmem>>, vector<2x128xf32>
    tpu.vector_store %arg9[%c0_17, %c0_18], %33 {strides = array<i32>} : memref<2x128xf32, #tpu.memory_space<vmem>>, vector<2x128xf32>,
    return
  }
  func.func @transform_0(%arg0: i32, %arg1: i32) -> (i32, i32) {
    %c0_i32 = arith.constant 0 : i32
    %c0_i32_0 = arith.constant 0 : i32
    return %arg0, %c0_i32 : i32, i32
  }
  func.func @transform_1(%arg0: i32, %arg1: i32) -> (i32, i32) {
    %c0_i32 = arith.constant 0 : i32
    %c0_i32_0 = arith.constant 0 : i32
    return %arg0, %c0_i32 : i32, i32
  }
  func.func @transform_2(%arg0: i32, %arg1: i32) -> (i32, i32) {
    %c0_i32 = arith.constant 0 : i32
    return %arg0, %arg1 : i32, i32
  }
  func.func @transform_3(%arg0: i32, %arg1: i32) -> (i32, i32) {
    %c0_i32 = arith.constant 0 : i32
    %c0_i32_0 = arith.constant 0 : i32
    return %c0_i32, %arg1 : i32, i32
  }
  func.func @transform_4(%arg0: i32, %arg1: i32) -> (i32, i32) {
    %c0_i32 = arith.constant 0 : i32
    %c0_i32_0 = arith.constant 0 : i32
    return %c0_i32, %arg1 : i32, i32
  }
  func.func @transform_5(%arg0: i32, %arg1: i32) -> (i32, i32) {
    %c0_i32 = arith.constant 0 : i32
    %c0_i32_0 = arith.constant 0 : i32
    return %c0_i32, %arg1 : i32, i32
  }
  func.func @transform_6(%arg0: i32, %arg1: i32) -> (i32, i32) {
    %c0_i32 = arith.constant 0 : i32
    return %arg0, %arg1 : i32, i32
  }
  func.func @transform_7(%arg0: i32, %arg1: i32) -> (i32, i32) {
    %c0_i32 = arith.constant 0 : i32
    return %arg0, %arg1 : i32, i32
  }
}

module attributes {stable_mosaic.version = 11 : i64} {
  func.func @lstm_cell_kernel(%arg0: i32, %arg1: i32, %arg2: memref<2x128xbf16, #tpu.memory_space<vmem>>, %arg3: memref<2x128xbf16, #tpu.memory_space<vmem>>, %arg4: memref<2x128xf32, #tpu.memory_space<vmem>>, %arg5: memref<128x512xbf16, #tpu.memory_space<vmem>>, %arg6: memref<128x512xbf16, #tpu.memory_space<vmem>>, %arg7: memref<1x512xf32, #tpu.memory_space<vmem>>, %arg8: memref<2x128xf32, #tpu.memory_space<vmem>>, %arg9: memref<2x128xf32, #tpu.memory_space<vmem>>) attributes {dimension_semantics = [#tpu.dimension_semantics<parallel>, #tpu.dimension_semantics<parallel>], iteration_bounds = array<i64: 1, 1>, scalar_prefetch = 0 : i64, scratch_operands = 0 : i64, tpu.core_type = #tpu.core_type<tc>, window_params = [{transform_indices = @transform_0, window_bounds = array<i64: 2, 128>}, {transform_indices = @transform_1, window_bounds = array<i64: 2, 128>}, {transform_indices = @transform_2, window_bounds = array<i64: 2, 128>}, {transform_indices = @transform_3, window_bounds = array<i64: 128, 512>}, {transform_indices = @transform_4, window_bounds = array<i64: 128, 512>}, {transform_indices = @transform_5, window_bounds = array<i64: 1, 512>}, {transform_indices = @transform_6, window_bounds = array<i64: 2, 128>}, {transform_indices = @transform_7, window_bounds = array<i64: 2, 128>}]} {
    %c0 = arith.constant 0 : index
    %c0_0 = arith.constant 0 : index
    %0 = vector.load %arg2[%c0, %c0_0] : memref<2x128xbf16, #tpu.memory_space<vmem>>, vector<2x128xbf16>
    %c0_1 = arith.constant 0 : index
    %c0_2 = arith.constant 0 : index
    %1 = vector.load %arg5[%c0_1, %c0_2] : memref<128x512xbf16, #tpu.memory_space<vmem>>, vector<128x512xbf16>
    %cst = arith.constant dense<0.000000e+00> : vector<2x512xf32>
    %2 = tpu.matmul %0, %1, %cst {dimension_numbers = #tpu.dot_dimension_numbers<[1], [0], [0], [1], [0, 0, 1, 1], [], []>} : vector<2x128xbf16>, vector<128x512xbf16>, vector<2x512xf32> -> vector<2x512xf32>
    %c0_3 = arith.constant 0 : index
    %c0_4 = arith.constant 0 : index
    %3 = vector.load %arg3[%c0_3, %c0_4] : memref<2x128xbf16, #tpu.memory_space<vmem>>, vector<2x128xbf16>
    %c0_5 = arith.constant 0 : index
    %c0_6 = arith.constant 0 : index
    %4 = vector.load %arg6[%c0_5, %c0_6] : memref<128x512xbf16, #tpu.memory_space<vmem>>, vector<128x512xbf16>
    %cst_7 = arith.constant dense<0.000000e+00> : vector<2x512xf32>
    %5 = tpu.matmul %3, %4, %cst_7 {dimension_numbers = #tpu.dot_dimension_numbers<[1], [0], [0], [1], [0, 0, 1, 1], [], []>} : vector<2x128xbf16>, vector<128x512xbf16>, vector<2x512xf32> -> vector<2x512xf32>
    %6 = arith.addf %2, %5 : vector<2x512xf32>
    %c0_8 = arith.constant 0 : index
    %c0_9 = arith.constant 0 : index
    %7 = vector.load %arg7[%c0_8, %c0_9] : memref<1x512xf32, #tpu.memory_space<vmem>>, vector<1x512xf32>
    %8 = vector.broadcast %7 : vector<1x512xf32> to vector<2x512xf32>
    %9 = arith.addf %6, %8 : vector<2x512xf32>
    %10 = vector.extract_strided_slice %9 {offsets = [0, 0], sizes = [2, 128], strides = [1, 1]} : vector<2x512xf32> to vector<2x128xf32>
    %11 = arith.negf %10 : vector<2x128xf32>
    %12 = math.exp %11 : vector<2x128xf32>
    %cst_10 = arith.constant 1.000000e+00 : f32
    %13 = vector.broadcast %cst_10 : f32 to vector<2x128xf32>
    %14 = arith.addf %13, %12 : vector<2x128xf32>
    %15 = arith.divf %13, %14 : vector<2x128xf32>
    %16 = vector.extract_strided_slice %9 {offsets = [0, 128], sizes = [2, 128], strides = [1, 1]} : vector<2x512xf32> to vector<2x128xf32>
    %17 = arith.negf %16 : vector<2x128xf32>
    %18 = math.exp %17 : vector<2x128xf32>
    %cst_11 = arith.constant 1.000000e+00 : f32
    %19 = vector.broadcast %cst_11 : f32 to vector<2x128xf32>
    %20 = arith.addf %19, %18 : vector<2x128xf32>
    %21 = arith.divf %19, %20 : vector<2x128xf32>
    %22 = vector.extract_strided_slice %9 {offsets = [0, 256], sizes = [2, 128], strides = [1, 1]} : vector<2x512xf32> to vector<2x128xf32>
    %23 = math.tanh %22 : vector<2x128xf32>
    %24 = vector.extract_strided_slice %9 {offsets = [0, 384], sizes = [2, 128], strides = [1, 1]} : vector<2x512xf32> to vector<2x128xf32>
    %25 = arith.negf %24 : vector<2x128xf32>
    %26 = math.exp %25 : vector<2x128xf32>
    %cst_12 = arith.constant 1.000000e+00 : f32
    %27 = vector.broadcast %cst_12 : f32 to vector<2x128xf32>
    %28 = arith.addf %27, %26 : vector<2x128xf32>
    %29 = arith.divf %27, %28 : vector<2x128xf32>
    %c0_13 = arith.constant 0 : index
    %c0_14 = arith.constant 0 : index
    %30 = vector.load %arg4[%c0_13, %c0_14] : memref<2x128xf32, #tpu.memory_space<vmem>>, vector<2x128xf32>
    %31 = arith.mulf %21, %30 : vector<2x128xf32>
    %32 = arith.mulf %15, %23 : vector<2x128xf32>
    %33 = arith.addf %31, %32 : vector<2x128xf32>
    %34 = math.tanh %33 : vector<2x128xf32>
    %35 = arith.mulf %29, %34 : vector<2x128xf32>
    %c0_15 = arith.constant 0 : index
    %c0_16 = arith.constant 0 : index
    %36 = vector.load %arg8[%c0_15, %c0_16] : memref<2x128xf32, #tpu.memory_space<vmem>>, vector<2x128xf32>
    tpu.vector_store %arg8[%c0_15, %c0_16], %35 {strides = array<i32>} : memref<2x128xf32, #tpu.memory_space<vmem>>, vector<2x128xf32>,
    %c0_17 = arith.constant 0 : index
    %c0_18 = arith.constant 0 : index
    %37 = vector.load %arg9[%c0_17, %c0_18] : memref<2x128xf32, #tpu.memory_space<vmem>>, vector<2x128xf32>
    tpu.vector_store %arg9[%c0_17, %c0_18], %33 {strides = array<i32>} : memref<2x128xf32, #tpu.memory_space<vmem>>, vector<2x128xf32>,
    return
  }
  func.func @transform_0(%arg0: i32, %arg1: i32) -> (i32, i32) {
    %c0_i32 = arith.constant 0 : i32
    %c0_i32_0 = arith.constant 0 : i32
    return %arg0, %c0_i32 : i32, i32
  }
  func.func @transform_1(%arg0: i32, %arg1: i32) -> (i32, i32) {
    %c0_i32 = arith.constant 0 : i32
    %c0_i32_0 = arith.constant 0 : i32
    return %arg0, %c0_i32 : i32, i32
  }
  func.func @transform_2(%arg0: i32, %arg1: i32) -> (i32, i32) {
    %c0_i32 = arith.constant 0 : i32
    return %arg0, %arg1 : i32, i32
  }
  func.func @transform_3(%arg0: i32, %arg1: i32) -> (i32, i32) {
    %c0_i32 = arith.constant 0 : i32
    %c0_i32_0 = arith.constant 0 : i32
    return %c0_i32, %arg1 : i32, i32
  }
  func.func @transform_4(%arg0: i32, %arg1: i32) -> (i32, i32) {
    %c0_i32 = arith.constant 0 : i32
    %c0_i32_0 = arith.constant 0 : i32
    return %c0_i32, %arg1 : i32, i32
  }
  func.func @transform_5(%arg0: i32, %arg1: i32) -> (i32, i32) {
    %c0_i32 = arith.constant 0 : i32
    %c0_i32_0 = arith.constant 0 : i32
    return %c0_i32, %arg1 : i32, i32
  }
  func.func @transform_6(%arg0: i32, %arg1: i32) -> (i32, i32) {
    %c0_i32 = arith.constant 0 : i32
    return %arg0, %arg1 : i32, i32
  }
  func.func @transform_7(%arg0: i32, %arg1: i32) -> (i32, i32) {
    %c0_i32 = arith.constant 0 : i32
    return %arg0, %arg1 : i32, i32
  }
}

</mosaic_0001>

<llo_original>
// kernel: tpu_custom_call.1
$region0: #{tpu_custom_call.1}
  #allocation0 [shape = 'u32[]', space=smem, size = 0x4, offset = 0x4, fixed_abs, tag = 'smem constant byte address 0x4 - core index']
  #allocation1 [shape = 'u32[144,128]{1,0:T(1,128)}', space=vmem, size = 0x12000, scoped, tag = 'internal scratch']
  %s0 = inlined_call_operand.hbm [shape: bf16[2,128], index: 0, kind: input, shape index: {}]
  %s1 = inlined_call_operand.vmem [shape: bf16[2,128], index: 1, kind: input, shape index: {}]
  %s2 = inlined_call_operand.vmem [shape: f32[2,128], index: 2, kind: input, shape index: {}]
  %s3 = inlined_call_operand.hbm [shape: bf16[128,512], index: 3, kind: input, shape index: {}]
  %s4 = inlined_call_operand.hbm [shape: bf16[128,512], index: 4, kind: input, shape index: {}]
  %s5 = inlined_call_operand.vmem [shape: f32[1,512], index: 5, kind: input, shape index: {}]
  %s6 = inlined_call_operand.hbm [shape: f32[2,128], index: 6, kind: output, shape index: {0}]
  %s7 = inlined_call_operand.hbm [shape: f32[2,128], index: 7, kind: output, shape index: {1}]
  %8 = xla_tuple %s6, %s7
  %s9 = sld [smem:[#allocation0]]
  $region54: #{tpu_custom_call.1} parent=0
    _
  %s11 = ssub.s32 1, %s9
  %s12 = scalar_select 0, %s11, %s9
  $region1: #{tpu_custom_call.1} parent=0
    #allocation2 [shape = 'u8[512]{0}', space=vmem, size = 0x400, scoped, tag = 'input window, operand 0, single buffered']
    #allocation3 [shape = 's32[1]{0}', space=sflag, size = 0x4, scoped, tag = 'scoped memory for tpu_custom_call.1']
    #allocation4 [shape = 's32[1]{0}', space=sflag, size = 0x4, scoped, tag = 'scoped memory for tpu_custom_call.1']
    #allocation5 [shape = 'u8[131072]{0}', space=vmem, size = 0x20000, scoped, tag = 'input window, operand 3, single buffered']
    #allocation6 [shape = 's32[1]{0}', space=sflag, size = 0x4, scoped, tag = 'scoped memory for tpu_custom_call.1']
    #allocation7 [shape = 'u8[131072]{0}', space=vmem, size = 0x20000, scoped, tag = 'input window, operand 4, single buffered']
    #allocation8 [shape = 'u8[1024]{0}', space=vmem, size = 0x400, scoped, tag = 'output window, operand 0, single buffered']
    #allocation9 [shape = 'u8[1024]{0}', space=vmem, size = 0x400, scoped, tag = 'output window, operand 1, single buffered']
    #allocation10 [shape = 's32[1]{0}', space=sflag, size = 0x4, scoped, tag = 'scoped memory for tpu_custom_call.1']
    %13 = vsyncpa [#allocation3], 0
    %14 = vsyncpa [#allocation6], 0
    %15 = vsyncpa [#allocation4], 0
    %16 = vsyncpa [#allocation10], 0
    // Predicated region
    $region2: #{tpu_custom_call.1} parent=1 // pred_check
      _
    $region3: #{tpu_custom_call.1} parent=1 // pred_check_branch
      %18 = sbr.rel (0) target = $region5
    $region4: #{tpu_custom_call.1} parent=1 // pred_region
      %s20 = ssub.s32 16, 16
      %21 = vsyncadd [#allocation3], %s20
      %s23 = sshll.u32 [#allocation2], 4
      %s24 = int_to_ptr.vmem [resolvable:$true] %s23
      %26 = dma.hbm_to_vmem [thread:$0]  %s0, 16, %s24, [#allocation3]
    $region5: #{tpu_custom_call.1} parent=1 // pred_fallthru
      _
    // Predicated region
    $region6: #{tpu_custom_call.1} parent=1 // pred_check
      _
    $region7: #{tpu_custom_call.1} parent=1 // pred_check_branch
      %28 = sbr.rel (0) target = $region9
    $region8: #{tpu_custom_call.1} parent=1 // pred_region
      _
    $region9: #{tpu_custom_call.1} parent=1 // pred_fallthru
      _
    // Predicated region
    $region10: #{tpu_custom_call.1} parent=1 // pred_check
      _
    $region11: #{tpu_custom_call.1} parent=1 // pred_check_branch
      %30 = sbr.rel (0) target = $region13
    $region12: #{tpu_custom_call.1} parent=1 // pred_region
      _
    $region13: #{tpu_custom_call.1} parent=1 // pred_fallthru
      _
    // Predicated region
    $region14: #{tpu_custom_call.1} parent=1 // pred_check
      _
    $region15: #{tpu_custom_call.1} parent=1 // pred_check_branch
      %32 = sbr.rel (0) target = $region17
    $region16: #{tpu_custom_call.1} parent=1 // pred_region
      %s34 = ssub.s32 4096, 4096
      %35 = vsyncadd [#allocation6], %s34
      %s36 = sshll.u32 [#allocation5], 4
      %s37 = int_to_ptr.vmem [resolvable:$true] %s36
      %42 = dma.hbm_to_vmem [thread:$0]  %s3, 4096, %s37, [#allocation6], 256, 256, 16
    $region17: #{tpu_custom_call.1} parent=1 // pred_fallthru
      _
    // Predicated region
    $region18: #{tpu_custom_call.1} parent=1 // pred_check
      _
    $region19: #{tpu_custom_call.1} parent=1 // pred_check_branch
      %44 = sbr.rel (0) target = $region21
    $region20: #{tpu_custom_call.1} parent=1 // pred_region
      %s46 = ssub.s32 4096, 4096
      %47 = vsyncadd [#allocation6], %s46
      %s48 = sshll.u32 [#allocation7], 4
      %s49 = int_to_ptr.vmem [resolvable:$true] %s48
      %54 = dma.hbm_to_vmem [thread:$0]  %s4, 4096, %s49, [#allocation6], 256, 256, 16
    $region21: #{tpu_custom_call.1} parent=1 // pred_fallthru
      _
    // Predicated region
    $region22: #{tpu_custom_call.1} parent=1 // pred_check
      _
    $region23: #{tpu_custom_call.1} parent=1 // pred_check_branch
      %56 = sbr.rel (0) target = $region25
    $region24: #{tpu_custom_call.1} parent=1 // pred_region
      _
    $region25: #{tpu_custom_call.1} parent=1 // pred_fallthru
      _
    // Predicated region
    $region26: #{tpu_custom_call.1} parent=1 // pred_check
      _
    $region27: #{tpu_custom_call.1} parent=1 // pred_check_branch
      %58 = sbr.rel (0) target = $region29
    $region28: #{tpu_custom_call.1} parent=1 // pred_region
      %59 = dma.done [#allocation3], 16
    $region29: #{tpu_custom_call.1} parent=1 // pred_fallthru
      _
    // Predicated region
    $region30: #{tpu_custom_call.1} parent=1 // pred_check
      _
    $region31: #{tpu_custom_call.1} parent=1 // pred_check_branch
      %61 = sbr.rel (0) target = $region33
    $region32: #{tpu_custom_call.1} parent=1 // pred_region
      %62 = dma.done [#allocation6], 4096
    $region33: #{tpu_custom_call.1} parent=1 // pred_fallthru
      _
    // Predicated region
    $region34: #{tpu_custom_call.1} parent=1 // pred_check
      _
    $region35: #{tpu_custom_call.1} parent=1 // pred_check_branch
      %64 = sbr.rel (0) target = $region37
    $region36: #{tpu_custom_call.1} parent=1 // pred_region
      %65 = dma.done [#allocation6], 4096
    $region37: #{tpu_custom_call.1} parent=1 // pred_fallthru
      _
    %v67 = vld [vmem:[#allocation2] sm:$0x1]
    %v68 = vld [vmem:[#allocation5] sm:$0xff]
    %v69 = vld [vmem:[#allocation5 + $0x8] sm:$0xff]
    %v70 = vld [vmem:[#allocation5 + $0x10] sm:$0xff]
    %v71 = vld [vmem:[#allocation5 + $0x18] sm:$0xff]
    %v72 = vld [vmem:[#allocation5 + $0x20] sm:$0xff]
    %v73 = vld [vmem:[#allocation5 + $0x28] sm:$0xff]
    %v74 = vld [vmem:[#allocation5 + $0x30] sm:$0xff]
    %v75 = vld [vmem:[#allocation5 + $0x38] sm:$0xff]
    %v76 = vld [vmem:[#allocation5 + $0x40] sm:$0xff]
    %v77 = vld [vmem:[#allocation5 + $0x48] sm:$0xff]
    %v78 = vld [vmem:[#allocation5 + $0x50] sm:$0xff]
    %v79 = vld [vmem:[#allocation5 + $0x58] sm:$0xff]
    %v80 = vld [vmem:[#allocation5 + $0x60] sm:$0xff]
    %v81 = vld [vmem:[#allocation5 + $0x68] sm:$0xff]
    %v82 = vld [vmem:[#allocation5 + $0x70] sm:$0xff]
    %v83 = vld [vmem:[#allocation5 + $0x78] sm:$0xff]
    %v84 = vld [vmem:[#allocation5 + $0x80] sm:$0xff]
    %v85 = vld [vmem:[#allocation5 + $0x88] sm:$0xff]
    %v86 = vld [vmem:[#allocation5 + $0x90] sm:$0xff]
    %v87 = vld [vmem:[#allocation5 + $0x98] sm:$0xff]
    %v88 = vld [vmem:[#allocation5 + $0xa0] sm:$0xff]
    %v89 = vld [vmem:[#allocation5 + $0xa8] sm:$0xff]
    %v90 = vld [vmem:[#allocation5 + $0xb0] sm:$0xff]
    %v91 = vld [vmem:[#allocation5 + $0xb8] sm:$0xff]
    %v92 = vld [vmem:[#allocation5 + $0xc0] sm:$0xff]
    %v93 = vld [vmem:[#allocation5 + $0xc8] sm:$0xff]
    %v94 = vld [vmem:[#allocation5 + $0xd0] sm:$0xff]
    %v95 = vld [vmem:[#allocation5 + $0xd8] sm:$0xff]
    %v96 = vld [vmem:[#allocation5 + $0xe0] sm:$0xff]
    %v97 = vld [vmem:[#allocation5 + $0xe8] sm:$0xff]
    %v98 = vld [vmem:[#allocation5 + $0xf0] sm:$0xff]
    %v99 = vld [vmem:[#allocation5 + $0xf8] sm:$0xff]
    %v100 = vld [vmem:[%s1] sm:$0x1]
    %v101 = vld [vmem:[#allocation7] sm:$0xff]
    %v102 = vld [vmem:[#allocation7 + $0x8] sm:$0xff]
    %v103 = vld [vmem:[#allocation7 + $0x10] sm:$0xff]
    %v104 = vld [vmem:[#allocation7 + $0x18] sm:$0xff]
    %v105 = vld [vmem:[#allocation7 + $0x20] sm:$0xff]
    %v106 = vld [vmem:[#allocation7 + $0x28] sm:$0xff]
    %v107 = vld [vmem:[#allocation7 + $0x30] sm:$0xff]
    %v108 = vld [vmem:[#allocation7 + $0x38] sm:$0xff]
    %v109 = vld [vmem:[#allocation7 + $0x40] sm:$0xff]
    %v110 = vld [vmem:[#allocation7 + $0x48] sm:$0xff]
    %v111 = vld [vmem:[#allocation7 + $0x50] sm:$0xff]
    %v112 = vld [vmem:[#allocation7 + $0x58] sm:$0xff]
    %v113 = vld [vmem:[#allocation7 + $0x60] sm:$0xff]
    %v114 = vld [vmem:[#allocation7 + $0x68] sm:$0xff]
    %v115 = vld [vmem:[#allocation7 + $0x70] sm:$0xff]
    %v116 = vld [vmem:[#allocation7 + $0x78] sm:$0xff]
    %v117 = vld [vmem:[#allocation7 + $0x80] sm:$0xff]
    %v118 = vld [vmem:[#allocation7 + $0x88] sm:$0xff]
    %v119 = vld [vmem:[#allocation7 + $0x90] sm:$0xff]
    %v120 = vld [vmem:[#allocation7 + $0x98] sm:$0xff]
    %v121 = vld [vmem:[#allocation7 + $0xa0] sm:$0xff]
    %v122 = vld [vmem:[#allocation7 + $0xa8] sm:$0xff]
    %v123 = vld [vmem:[#allocation7 + $0xb0] sm:$0xff]
    %v124 = vld [vmem:[#allocation7 + $0xb8] sm:$0xff]
    %v125 = vld [vmem:[#allocation7 + $0xc0] sm:$0xff]
    %v126 = vld [vmem:[#allocation7 + $0xc8] sm:$0xff]
    %v127 = vld [vmem:[#allocation7 + $0xd0] sm:$0xff]
    %v128 = vld [vmem:[#allocation7 + $0xd8] sm:$0xff]
    %v129 = vld [vmem:[#allocation7 + $0xe0] sm:$0xff]
    %v130 = vld [vmem:[#allocation7 + $0xe8] sm:$0xff]
    %v131 = vld [vmem:[#allocation7 + $0xf0] sm:$0xff]
    %v132 = vld [vmem:[#allocation7 + $0xf8] sm:$0xff]
    %v165 = vunpack.c.l.b16 %v101
    %v166 = vunpack.c.h.b16 %v101
    %v167 = vunpack.c.l.b16 %v102
    %v168 = vunpack.c.h.b16 %v102
    %v169 = vunpack.c.l.b16 %v103
    %v170 = vunpack.c.h.b16 %v103
    %v171 = vunpack.c.l.b16 %v104
    %v172 = vunpack.c.h.b16 %v104
    %v173 = vunpack.c.l.b16 %v105
    %v174 = vunpack.c.h.b16 %v105
    %v175 = vunpack.c.l.b16 %v106
    %v176 = vunpack.c.h.b16 %v106
    %v177 = vunpack.c.l.b16 %v107
    %v178 = vunpack.c.h.b16 %v107
    %v179 = vunpack.c.l.b16 %v108
    %v180 = vunpack.c.h.b16 %v108
    %v181 = vunpack.c.l.b16 %v109
    %v182 = vunpack.c.h.b16 %v109
    %v183 = vunpack.c.l.b16 %v110
    %v184 = vunpack.c.h.b16 %v110
    %v185 = vunpack.c.l.b16 %v111
    %v186 = vunpack.c.h.b16 %v111
    %v187 = vunpack.c.l.b16 %v112
    %v188 = vunpack.c.h.b16 %v112
    %v189 = vunpack.c.l.b16 %v113
    %v190 = vunpack.c.h.b16 %v113
    %v191 = vunpack.c.l.b16 %v114
    %v192 = vunpack.c.h.b16 %v114
    %v193 = vunpack.c.l.b16 %v115
    %v194 = vunpack.c.h.b16 %v115
    %v195 = vunpack.c.l.b16 %v116
    %v196 = vunpack.c.h.b16 %v116
    %v197 = vunpack.c.l.b16 %v117
    %v198 = vunpack.c.h.b16 %v117
    %v199 = vunpack.c.l.b16 %v118
    %v200 = vunpack.c.h.b16 %v118
    %v201 = vunpack.c.l.b16 %v119
    %v202 = vunpack.c.h.b16 %v119
    %v203 = vunpack.c.l.b16 %v120
    %v204 = vunpack.c.h.b16 %v120
    %v205 = vunpack.c.l.b16 %v121
    %v206 = vunpack.c.h.b16 %v121
    %v207 = vunpack.c.l.b16 %v122
    %v208 = vunpack.c.h.b16 %v122
    %v209 = vunpack.c.l.b16 %v123
    %v210 = vunpack.c.h.b16 %v123
    %v211 = vunpack.c.l.b16 %v124
    %v212 = vunpack.c.h.b16 %v124
    %v213 = vunpack.c.l.b16 %v125
    %v214 = vunpack.c.h.b16 %v125
    %v215 = vunpack.c.l.b16 %v126
    %v216 = vunpack.c.h.b16 %v126
    %v217 = vunpack.c.l.b16 %v127
    %v218 = vunpack.c.h.b16 %v127
    %v219 = vunpack.c.l.b16 %v128
    %v220 = vunpack.c.h.b16 %v128
    %v221 = vunpack.c.l.b16 %v129
    %v222 = vunpack.c.h.b16 %v129
    %v223 = vunpack.c.l.b16 %v130
    %v224 = vunpack.c.h.b16 %v130
    %v225 = vunpack.c.l.b16 %v131
    %v226 = vunpack.c.h.b16 %v131
    %v227 = vunpack.c.l.b16 %v132
    %v228 = vunpack.c.h.b16 %v132
    %v229 = vpack.c.b16 %v169, %v165
    %v230 = vpack.c.b16 %v170, %v166
    %v231 = vpack.c.b16 %v171, %v167
    %v232 = vpack.c.b16 %v172, %v168
    %v233 = vpack.c.b16 %v177, %v173
    %v234 = vpack.c.b16 %v178, %v174
    %v235 = vpack.c.b16 %v179, %v175
    %v236 = vpack.c.b16 %v180, %v176
    %v237 = vpack.c.b16 %v185, %v181
    %v238 = vpack.c.b16 %v186, %v182
    %v239 = vpack.c.b16 %v187, %v183
    %v240 = vpack.c.b16 %v188, %v184
    %v241 = vpack.c.b16 %v193, %v189
    %v242 = vpack.c.b16 %v194, %v190
    %v243 = vpack.c.b16 %v195, %v191
    %v244 = vpack.c.b16 %v196, %v192
    %v245 = vpack.c.b16 %v201, %v197
    %v246 = vpack.c.b16 %v202, %v198
    %v247 = vpack.c.b16 %v203, %v199
    %v248 = vpack.c.b16 %v204, %v200
    %v249 = vpack.c.b16 %v209, %v205
    %v250 = vpack.c.b16 %v210, %v206
    %v251 = vpack.c.b16 %v211, %v207
    %v252 = vpack.c.b16 %v212, %v208
    %v253 = vpack.c.b16 %v217, %v213
    %v254 = vpack.c.b16 %v218, %v214
    %v255 = vpack.c.b16 %v219, %v215
    %v256 = vpack.c.b16 %v220, %v216
    %v257 = vpack.c.b16 %v225, %v221
    %v258 = vpack.c.b16 %v226, %v222
    %v259 = vpack.c.b16 %v227, %v223
    %v260 = vpack.c.b16 %v228, %v224
    %293 = vmatprep.subr.bf16.mxu0 %v258
    %294 = vmatpush1.bf16.msra.mxu0 %v257
    %295 = vmatprep.subr.bf16.mxu0 %v254
    %296 = vmatpush1.bf16.msra.mxu0 %v253
    %297 = vmatprep.subr.bf16.mxu0 %v250
    %298 = vmatpush1.bf16.msra.mxu0 %v249
    %299 = vmatprep.subr.bf16.mxu0 %v246
    %300 = vmatpush1.bf16.msra.mxu0 %v245
    %301 = vmatprep.subr.bf16.mxu0 %v242
    %302 = vmatpush1.bf16.msra.mxu0 %v241
    %303 = vmatprep.subr.bf16.mxu0 %v238
    %304 = vmatpush1.bf16.msra.mxu0 %v237
    %305 = vmatprep.subr.bf16.mxu0 %v234
    %306 = vmatpush1.bf16.msra.mxu0 %v233
    %307 = vmatprep.subr.bf16.mxu0 %v230
    %308 = vmatpush1.bf16.msra.mxu0 %v229
    %309 = vmatprep.subr.bf16.mxu0 0
    %310 = vmatpush2.bf16.msra.mxu0 0
    %311 = vmatprep.subr.bf16.mxu0 0
    %312 = vmatpush2.bf16.msra.mxu0 0
    %313 = vmatprep.subr.bf16.mxu0 0
    %314 = vmatpush2.bf16.msra.mxu0 0
    %315 = vmatprep.subr.bf16.mxu0 0
    %316 = vmatpush2.bf16.msra.mxu0 0
    %317 = vmatprep.subr.bf16.mxu0 0
    %318 = vmatpush2.bf16.msra.mxu0 0
    %319 = vmatprep.subr.bf16.mxu0 0
    %320 = vmatpush2.bf16.msra.mxu0 0
    %321 = vmatprep.subr.bf16.mxu0 0
    %322 = vmatpush2.bf16.msra.mxu0 0
    %323 = vmatprep.subr.bf16.mxu0 0
    %324 = vmatpush2.bf16.msra.mxu0 0
    %325 = vmatprep.mubr.bf16.mxu0 0
    %326 = vmatmul.mubr.bf16.gmra.mxu0 %v100
    %v327 = vpop.f32.mrf.mxu0
    %v328 = vadd.f32 0.0, %v327
    %v329 = vpop.f32.mrf.mxu0
    %v330 = vadd.f32 0.0, %v329
    %v331 = vpop.f32.mrf.mxu0
    %v332 = vpop.f32.mrf.mxu0
    %333 = vdwg.mxu0
    %334 = vmatprep.subr.bf16.mxu0 %v260
    %335 = vmatpush1.bf16.msra.mxu0 %v259
    %336 = vmatprep.subr.bf16.mxu0 %v256
    %337 = vmatpush1.bf16.msra.mxu0 %v255
    %338 = vmatprep.subr.bf16.mxu0 %v252
    %339 = vmatpush1.bf16.msra.mxu0 %v251
    %340 = vmatprep.subr.bf16.mxu0 %v248
    %341 = vmatpush1.bf16.msra.mxu0 %v247
    %342 = vmatprep.subr.bf16.mxu0 %v244
    %343 = vmatpush1.bf16.msra.mxu0 %v243
    %344 = vmatprep.subr.bf16.mxu0 %v240
    %345 = vmatpush1.bf16.msra.mxu0 %v239
    %346 = vmatprep.subr.bf16.mxu0 %v236
    %347 = vmatpush1.bf16.msra.mxu0 %v235
    %348 = vmatprep.subr.bf16.mxu0 %v232
    %349 = vmatpush1.bf16.msra.mxu0 %v231
    %350 = vmatprep.subr.bf16.mxu0 0
    %351 = vmatpush2.bf16.msra.mxu0 0
    %352 = vmatprep.subr.bf16.mxu0 0
    %353 = vmatpush2.bf16.msra.mxu0 0
    %354 = vmatprep.subr.bf16.mxu0 0
    %355 = vmatpush2.bf16.msra.mxu0 0
    %356 = vmatprep.subr.bf16.mxu0 0
    %357 = vmatpush2.bf16.msra.mxu0 0
    %358 = vmatprep.subr.bf16.mxu0 0
    %359 = vmatpush2.bf16.msra.mxu0 0
    %360 = vmatprep.subr.bf16.mxu0 0
    %361 = vmatpush2.bf16.msra.mxu0 0
    %362 = vmatprep.subr.bf16.mxu0 0
    %363 = vmatpush2.bf16.msra.mxu0 0
    %364 = vmatprep.subr.bf16.mxu0 0
    %365 = vmatpush2.bf16.msra.mxu0 0
    %366 = vmatprep.mubr.bf16.mxu0 0
    %367 = vmatmul.mubr.bf16.gmra.mxu0 %v100
    %v368 = vpop.f32.mrf.mxu0
    %v369 = vadd.f32 0.0, %v368
    %v370 = vpop.f32.mrf.mxu0
    %v371 = vadd.f32 0.0, %v370
    %v372 = vpop.f32.mrf.mxu0
    %v373 = vpop.f32.mrf.mxu0
    %374 = vdwg.mxu0
    %v407 = vunpack.c.l.b16 %v68
    %v408 = vunpack.c.h.b16 %v68
    %v409 = vunpack.c.l.b16 %v69
    %v410 = vunpack.c.h.b16 %v69
    %v411 = vunpack.c.l.b16 %v70
    %v412 = vunpack.c.h.b16 %v70
    %v413 = vunpack.c.l.b16 %v71
    %v414 = vunpack.c.h.b16 %v71
    %v415 = vunpack.c.l.b16 %v72
    %v416 = vunpack.c.h.b16 %v72
    %v417 = vunpack.c.l.b16 %v73
    %v418 = vunpack.c.h.b16 %v73
    %v419 = vunpack.c.l.b16 %v74
    %v420 = vunpack.c.h.b16 %v74
    %v421 = vunpack.c.l.b16 %v75
    %v422 = vunpack.c.h.b16 %v75
    %v423 = vunpack.c.l.b16 %v76
    %v424 = vunpack.c.h.b16 %v76
    %v425 = vunpack.c.l.b16 %v77
    %v426 = vunpack.c.h.b16 %v77
    %v427 = vunpack.c.l.b16 %v78
    %v428 = vunpack.c.h.b16 %v78
    %v429 = vunpack.c.l.b16 %v79
    %v430 = vunpack.c.h.b16 %v79
    %v431 = vunpack.c.l.b16 %v80
    %v432 = vunpack.c.h.b16 %v80
    %v433 = vunpack.c.l.b16 %v81
    %v434 = vunpack.c.h.b16 %v81
    %v435 = vunpack.c.l.b16 %v82
    %v436 = vunpack.c.h.b16 %v82
    %v437 = vunpack.c.l.b16 %v83
    %v438 = vunpack.c.h.b16 %v83
    %v439 = vunpack.c.l.b16 %v84
    %v440 = vunpack.c.h.b16 %v84
    %v441 = vunpack.c.l.b16 %v85
    %v442 = vunpack.c.h.b16 %v85
    %v443 = vunpack.c.l.b16 %v86
    %v444 = vunpack.c.h.b16 %v86
    %v445 = vunpack.c.l.b16 %v87
    %v446 = vunpack.c.h.b16 %v87
    %v447 = vunpack.c.l.b16 %v88
    %v448 = vunpack.c.h.b16 %v88
    %v449 = vunpack.c.l.b16 %v89
    %v450 = vunpack.c.h.b16 %v89
    %v451 = vunpack.c.l.b16 %v90
    %v452 = vunpack.c.h.b16 %v90
    %v453 = vunpack.c.l.b16 %v91
    %v454 = vunpack.c.h.b16 %v91
    %v455 = vunpack.c.l.b16 %v92
    %v456 = vunpack.c.h.b16 %v92
    %v457 = vunpack.c.l.b16 %v93
    %v458 = vunpack.c.h.b16 %v93
    %v459 = vunpack.c.l.b16 %v94
    %v460 = vunpack.c.h.b16 %v94
    %v461 = vunpack.c.l.b16 %v95
    %v462 = vunpack.c.h.b16 %v95
    %v463 = vunpack.c.l.b16 %v96
    %v464 = vunpack.c.h.b16 %v96
    %v465 = vunpack.c.l.b16 %v97
    %v466 = vunpack.c.h.b16 %v97
    %v467 = vunpack.c.l.b16 %v98
    %v468 = vunpack.c.h.b16 %v98
    %v469 = vunpack.c.l.b16 %v99
    %v470 = vunpack.c.h.b16 %v99
    %v471 = vpack.c.b16 %v411, %v407
    %v472 = vpack.c.b16 %v412, %v408
    %v473 = vpack.c.b16 %v413, %v409
    %v474 = vpack.c.b16 %v414, %v410
    %v475 = vpack.c.b16 %v419, %v415
    %v476 = vpack.c.b16 %v420, %v416
    %v477 = vpack.c.b16 %v421, %v417
    %v478 = vpack.c.b16 %v422, %v418
    %v479 = vpack.c.b16 %v427, %v423
    %v480 = vpack.c.b16 %v428, %v424
    %v481 = vpack.c.b16 %v429, %v425
    %v482 = vpack.c.b16 %v430, %v426
    %v483 = vpack.c.b16 %v435, %v431
    %v484 = vpack.c.b16 %v436, %v432
    %v485 = vpack.c.b16 %v437, %v433
    %v486 = vpack.c.b16 %v438, %v434
    %v487 = vpack.c.b16 %v443, %v439
    %v488 = vpack.c.b16 %v444, %v440
    %v489 = vpack.c.b16 %v445, %v441
    %v490 = vpack.c.b16 %v446, %v442
    %v491 = vpack.c.b16 %v451, %v447
    %v492 = vpack.c.b16 %v452, %v448
    %v493 = vpack.c.b16 %v453, %v449
    %v494 = vpack.c.b16 %v454, %v450
    %v495 = vpack.c.b16 %v459, %v455
    %v496 = vpack.c.b16 %v460, %v456
    %v497 = vpack.c.b16 %v461, %v457
    %v498 = vpack.c.b16 %v462, %v458
    %v499 = vpack.c.b16 %v467, %v463
    %v500 = vpack.c.b16 %v468, %v464
    %v501 = vpack.c.b16 %v469, %v465
    %v502 = vpack.c.b16 %v470, %v466
    %535 = vmatprep.subr.bf16.mxu0 %v500
    %536 = vmatpush1.bf16.msra.mxu0 %v499
    %537 = vmatprep.subr.bf16.mxu0 %v496
    %538 = vmatpush1.bf16.msra.mxu0 %v495
    %539 = vmatprep.subr.bf16.mxu0 %v492
    %540 = vmatpush1.bf16.msra.mxu0 %v491
    %541 = vmatprep.subr.bf16.mxu0 %v488
    %542 = vmatpush1.bf16.msra.mxu0 %v487
    %543 = vmatprep.subr.bf16.mxu0 %v484
    %544 = vmatpush1.bf16.msra.mxu0 %v483
    %545 = vmatprep.subr.bf16.mxu0 %v480
    %546 = vmatpush1.bf16.msra.mxu0 %v479
    %547 = vmatprep.subr.bf16.mxu0 %v476
    %548 = vmatpush1.bf16.msra.mxu0 %v475
    %549 = vmatprep.subr.bf16.mxu0 %v472
    %550 = vmatpush1.bf16.msra.mxu0 %v471
    %551 = vmatprep.subr.bf16.mxu0 0
    %552 = vmatpush2.bf16.msra.mxu0 0
    %553 = vmatprep.subr.bf16.mxu0 0
    %554 = vmatpush2.bf16.msra.mxu0 0
    %555 = vmatprep.subr.bf16.mxu0 0
    %556 = vmatpush2.bf16.msra.mxu0 0
    %557 = vmatprep.subr.bf16.mxu0 0
    %558 = vmatpush2.bf16.msra.mxu0 0
    %559 = vmatprep.subr.bf16.mxu0 0
    %560 = vmatpush2.bf16.msra.mxu0 0
    %561 = vmatprep.subr.bf16.mxu0 0
    %562 = vmatpush2.bf16.msra.mxu0 0
    %563 = vmatprep.subr.bf16.mxu0 0
    %564 = vmatpush2.bf16.msra.mxu0 0
    %565 = vmatprep.subr.bf16.mxu0 0
    %566 = vmatpush2.bf16.msra.mxu0 0
    %567 = vmatprep.mubr.bf16.mxu0 0
    %568 = vmatmul.mubr.bf16.gmra.mxu0 %v67
    %v569 = vpop.f32.mrf.mxu0
    %v570 = vadd.f32 %v328, %v569
    %v571 = vpop.f32.mrf.mxu0
    %v572 = vadd.f32 %v330, %v571
    %v573 = vpop.f32.mrf.mxu0
    %v574 = vpop.f32.mrf.mxu0
    %575 = vdwg.mxu0
    %576 = vmatprep.subr.bf16.mxu0 %v502
    %577 = vmatpush1.bf16.msra.mxu0 %v501
    %578 = vmatprep.subr.bf16.mxu0 %v498
    %579 = vmatpush1.bf16.msra.mxu0 %v497
    %580 = vmatprep.subr.bf16.mxu0 %v494
    %581 = vmatpush1.bf16.msra.mxu0 %v493
    %582 = vmatprep.subr.bf16.mxu0 %v490
    %583 = vmatpush1.bf16.msra.mxu0 %v489
    %584 = vmatprep.subr.bf16.mxu0 %v486
    %585 = vmatpush1.bf16.msra.mxu0 %v485
    %586 = vmatprep.subr.bf16.mxu0 %v482
    %587 = vmatpush1.bf16.msra.mxu0 %v481
    %588 = vmatprep.subr.bf16.mxu0 %v478
    %589 = vmatpush1.bf16.msra.mxu0 %v477
    %590 = vmatprep.subr.bf16.mxu0 %v474
    %591 = vmatpush1.bf16.msra.mxu0 %v473
    %592 = vmatprep.subr.bf16.mxu0 0
    %593 = vmatpush2.bf16.msra.mxu0 0
    %594 = vmatprep.subr.bf16.mxu0 0
    %595 = vmatpush2.bf16.msra.mxu0 0
    %596 = vmatprep.subr.bf16.mxu0 0
    %597 = vmatpush2.bf16.msra.mxu0 0
    %598 = vmatprep.subr.bf16.mxu0 0
    %599 = vmatpush2.bf16.msra.mxu0 0
    %600 = vmatprep.subr.bf16.mxu0 0
    %601 = vmatpush2.bf16.msra.mxu0 0
    %602 = vmatprep.subr.bf16.mxu0 0
    %603 = vmatpush2.bf16.msra.mxu0 0
    %604 = vmatprep.subr.bf16.mxu0 0
    %605 = vmatpush2.bf16.msra.mxu0 0
    %606 = vmatprep.subr.bf16.mxu0 0
    %607 = vmatpush2.bf16.msra.mxu0 0
    %608 = vmatprep.mubr.bf16.mxu0 0
    %609 = vmatmul.mubr.bf16.gmra.mxu0 %v67
    %v610 = vpop.f32.mrf.mxu0
    %v611 = vadd.f32 %v369, %v610
    %v612 = vpop.f32.mrf.mxu0
    %v613 = vadd.f32 %v371, %v612
    %v614 = vpop.f32.mrf.mxu0
    %v615 = vpop.f32.mrf.mxu0
    %616 = vdwg.mxu0
    %v617 = vld [vmem:[%s5] sm:$0xf]
    %v619 = vlaneseq
    %v620 = vshrl.u32 %v619, 7
    %v621 = vsub.s32 0, %v620
    %v622 = vrot.slane %v617, %v621
    %v623 = vlaneseq
    %v624 = vshrl.u32 %v623, 7
    %v625 = vsub.s32 1, %v624
    %v626 = vrot.slane %v617, %v625
    %v627 = vlaneseq
    %v628 = vshrl.u32 %v627, 7
    %v629 = vsub.s32 2, %v628
    %v630 = vrot.slane %v617, %v629
    %v631 = vlaneseq
    %v632 = vshrl.u32 %v631, 7
    %v633 = vsub.s32 3, %v632
    %v634 = vrot.slane %v617, %v633
    %v639 = vadd.f32 %v570, %v622
    %v640 = vadd.f32 %v572, %v626
    %v641 = vadd.f32 %v611, %v630
    %v642 = vadd.f32 %v613, %v634
    %v643 = vxor.u32 %v639, 2147483648
    %v644 = vmul.f32 %v643, 1.442695
    %v645 = vpow.pop %v644
    %v646 = vadd.f32 %v645, 1.0
    %v647 = vrcp.pop %v646
    %v648 = vmul.f32 1.0, %v647
    %v649 = vxor.u32 %v640, 2147483648
    %v650 = vmul.f32 %v649, 1.442695
    %v651 = vpow.pop %v650
    %v652 = vadd.f32 %v651, 1.0
    %v653 = vrcp.pop %v652
    %v654 = vmul.f32 1.0, %v653
    %v655 = vtanh.pop %v641
    %v656 = vxor.u32 %v642, 2147483648
    %v657 = vmul.f32 %v656, 1.442695
    %v658 = vpow.pop %v657
    %v659 = vadd.f32 %v658, 1.0
    %v660 = vrcp.pop %v659
    %v661 = vmul.f32 1.0, %v660
    %v662 = vld [vmem:[%s2] sm:$0x3]
    %v663 = vmul.f32 %v654, %v662
    %v664 = vmul.f32 %v648, %v655
    %v665 = vadd.f32 %v663, %v664
    %v666 = vtanh.pop %v665
    %v667 = vmul.f32 %v661, %v666
    %668 = vst [vmem:[#allocation8] sm:$0x3] %v667
    %669 = vst [vmem:[#allocation9] sm:$0x3] %v665
    // Predicated region
    $region38: #{tpu_custom_call.1} parent=1 // pred_check
      _
    $region39: #{tpu_custom_call.1} parent=1 // pred_check_branch
      %671 = sbr.rel (0) target = $region41
    $region40: #{tpu_custom_call.1} parent=1 // pred_region
      %s673 = ssub.s32 32, 32
      %674 = vsyncadd [#allocation4], %s673
      %s676 = sshll.u32 [#allocation8], 4
      %s677 = int_to_ptr.vmem [resolvable:$true] %s676
      %679 = dma.vmem_to_hbm [thread:$0]  %s677, 32, %s6, [#allocation4]
    $region41: #{tpu_custom_call.1} parent=1 // pred_fallthru
      _
    // Predicated region
    $region42: #{tpu_custom_call.1} parent=1 // pred_check
      _
    $region43: #{tpu_custom_call.1} parent=1 // pred_check_branch
      %681 = sbr.rel (0) target = $region45
    $region44: #{tpu_custom_call.1} parent=1 // pred_region
      %s683 = ssub.s32 32, 32
      %684 = vsyncadd [#allocation10], %s683
      %s686 = sshll.u32 [#allocation9], 4
      %s687 = int_to_ptr.vmem [resolvable:$true] %s686
      %689 = dma.vmem_to_hbm [thread:$0]  %s687, 32, %s7, [#allocation10]
    $region45: #{tpu_custom_call.1} parent=1 // pred_fallthru
      _
    // Predicated region
    $region46: #{tpu_custom_call.1} parent=1 // pred_check
      _
    $region47: #{tpu_custom_call.1} parent=1 // pred_check_branch
      %691 = sbr.rel (0) target = $region49
    $region48: #{tpu_custom_call.1} parent=1 // pred_region
      %692 = dma.done [#allocation4], 32
    $region49: #{tpu_custom_call.1} parent=1 // pred_fallthru
      _
    // Predicated region
    $region50: #{tpu_custom_call.1} parent=1 // pred_check
      _
    $region51: #{tpu_custom_call.1} parent=1 // pred_check_branch
      %694 = sbr.rel (0) target = $region53
    $region52: #{tpu_custom_call.1} parent=1 // pred_region
      %695 = dma.done [#allocation10], 32
    $region53: #{tpu_custom_call.1} parent=1 // pred_fallthru
      _
    %696 = vsyncpa [#allocation3], 1
    %697 = vsyncpa [#allocation6], 1
    %698 = vsyncpa [#allocation4], 1
    %699 = vsyncpa [#allocation10], 1

// kernel: tpu_custom_call.1
$region0: #{tpu_custom_call.1}
  #allocation0 [shape = 'u32[]', space=smem, size = 0x4, offset = 0x4, fixed_abs, tag = 'smem constant byte address 0x4 - core index']
  #allocation1 [shape = 'u32[144,128]{1,0:T(1,128)}', space=vmem, size = 0x12000, scoped, tag = 'internal scratch']
  %s0 = inlined_call_operand.hbm [shape: bf16[2,128], index: 0, kind: input, shape index: {}]
  %s1 = inlined_call_operand.vmem [shape: bf16[2,128], index: 1, kind: input, shape index: {}]
  %s2 = inlined_call_operand.vmem [shape: f32[2,128], index: 2, kind: input, shape index: {}]
  %s3 = inlined_call_operand.hbm [shape: bf16[128,512], index: 3, kind: input, shape index: {}]
  %s4 = inlined_call_operand.hbm [shape: bf16[128,512], index: 4, kind: input, shape index: {}]
  %s5 = inlined_call_operand.vmem [shape: f32[1,512], index: 5, kind: input, shape index: {}]
  %s6 = inlined_call_operand.hbm [shape: f32[2,128], index: 6, kind: output, shape index: {0}]
  %s7 = inlined_call_operand.hbm [shape: f32[2,128], index: 7, kind: output, shape index: {1}]
  %8 = xla_tuple %s6, %s7
  %s9 = sld [smem:[#allocation0]]
  $region54: #{tpu_custom_call.1} parent=0
    _
  %s11 = ssub.s32 1, %s9
  %s12 = scalar_select 0, %s11, %s9
  $region1: #{tpu_custom_call.1} parent=0
    #allocation2 [shape = 'u8[512]{0}', space=vmem, size = 0x400, scoped, tag = 'input window, operand 0, single buffered']
    #allocation3 [shape = 's32[1]{0}', space=sflag, size = 0x4, scoped, tag = 'scoped memory for tpu_custom_call.1']
    #allocation4 [shape = 's32[1]{0}', space=sflag, size = 0x4, scoped, tag = 'scoped memory for tpu_custom_call.1']
    #allocation5 [shape = 'u8[131072]{0}', space=vmem, size = 0x20000, scoped, tag = 'input window, operand 3, single buffered']
    #allocation6 [shape = 's32[1]{0}', space=sflag, size = 0x4, scoped, tag = 'scoped memory for tpu_custom_call.1']
    #allocation7 [shape = 'u8[131072]{0}', space=vmem, size = 0x20000, scoped, tag = 'input window, operand 4, single buffered']
    #allocation8 [shape = 'u8[1024]{0}', space=vmem, size = 0x400, scoped, tag = 'output window, operand 0, single buffered']
    #allocation9 [shape = 'u8[1024]{0}', space=vmem, size = 0x400, scoped, tag = 'output window, operand 1, single buffered']
    #allocation10 [shape = 's32[1]{0}', space=sflag, size = 0x4, scoped, tag = 'scoped memory for tpu_custom_call.1']
    %13 = vsyncpa [#allocation3], 0
    %14 = vsyncpa [#allocation6], 0
    %15 = vsyncpa [#allocation4], 0
    %16 = vsyncpa [#allocation10], 0
    // Predicated region
    $region2: #{tpu_custom_call.1} parent=1 // pred_check
      _
    $region3: #{tpu_custom_call.1} parent=1 // pred_check_branch
      %18 = sbr.rel (0) target = $region5
    $region4: #{tpu_custom_call.1} parent=1 // pred_region
      %s20 = ssub.s32 16, 16
      %21 = vsyncadd [#allocation3], %s20
      %s23 = sshll.u32 [#allocation2], 4
      %s24 = int_to_ptr.vmem [resolvable:$true] %s23
      %26 = dma.hbm_to_vmem [thread:$0]  %s0, 16, %s24, [#allocation3]
    $region5: #{tpu_custom_call.1} parent=1 // pred_fallthru
      _
    // Predicated region
    $region6: #{tpu_custom_call.1} parent=1 // pred_check
      _
    $region7: #{tpu_custom_call.1} parent=1 // pred_check_branch
      %28 = sbr.rel (0) target = $region9
    $region8: #{tpu_custom_call.1} parent=1 // pred_region
      _
    $region9: #{tpu_custom_call.1} parent=1 // pred_fallthru
      _
    // Predicated region
    $region10: #{tpu_custom_call.1} parent=1 // pred_check
      _
    $region11: #{tpu_custom_call.1} parent=1 // pred_check_branch
      %30 = sbr.rel (0) target = $region13
    $region12: #{tpu_custom_call.1} parent=1 // pred_region
      _
    $region13: #{tpu_custom_call.1} parent=1 // pred_fallthru
      _
    // Predicated region
    $region14: #{tpu_custom_call.1} parent=1 // pred_check
      _
    $region15: #{tpu_custom_call.1} parent=1 // pred_check_branch
      %32 = sbr.rel (0) target = $region17
    $region16: #{tpu_custom_call.1} parent=1 // pred_region
      %s34 = ssub.s32 4096, 4096
      %35 = vsyncadd [#allocation6], %s34
      %s36 = sshll.u32 [#allocation5], 4
      %s37 = int_to_ptr.vmem [resolvable:$true] %s36
      %42 = dma.hbm_to_vmem [thread:$0]  %s3, 4096, %s37, [#allocation6], 256, 256, 16
    $region17: #{tpu_custom_call.1} parent=1 // pred_fallthru
      _
    // Predicated region
    $region18: #{tpu_custom_call.1} parent=1 // pred_check
      _
    $region19: #{tpu_custom_call.1} parent=1 // pred_check_branch
      %44 = sbr.rel (0) target = $region21
    $region20: #{tpu_custom_call.1} parent=1 // pred_region
      %s46 = ssub.s32 4096, 4096
      %47 = vsyncadd [#allocation6], %s46
      %s48 = sshll.u32 [#allocation7], 4
      %s49 = int_to_ptr.vmem [resolvable:$true] %s48
      %54 = dma.hbm_to_vmem [thread:$0]  %s4, 4096, %s49, [#allocation6], 256, 256, 16
    $region21: #{tpu_custom_call.1} parent=1 // pred_fallthru
      _
    // Predicated region
    $region22: #{tpu_custom_call.1} parent=1 // pred_check
      _
    $region23: #{tpu_custom_call.1} parent=1 // pred_check_branch
      %56 = sbr.rel (0) target = $region25
    $region24: #{tpu_custom_call.1} parent=1 // pred_region
      _
    $region25: #{tpu_custom_call.1} parent=1 // pred_fallthru
      _
    // Predicated region
    $region26: #{tpu_custom_call.1} parent=1 // pred_check
      _
    $region27: #{tpu_custom_call.1} parent=1 // pred_check_branch
      %58 = sbr.rel (0) target = $region29
    $region28: #{tpu_custom_call.1} parent=1 // pred_region
      %59 = dma.done [#allocation3], 16
    $region29: #{tpu_custom_call.1} parent=1 // pred_fallthru
      _
    // Predicated region
    $region30: #{tpu_custom_call.1} parent=1 // pred_check
      _
    $region31: #{tpu_custom_call.1} parent=1 // pred_check_branch
      %61 = sbr.rel (0) target = $region33
    $region32: #{tpu_custom_call.1} parent=1 // pred_region
      %62 = dma.done [#allocation6], 4096
    $region33: #{tpu_custom_call.1} parent=1 // pred_fallthru
      _
    // Predicated region
    $region34: #{tpu_custom_call.1} parent=1 // pred_check
      _
    $region35: #{tpu_custom_call.1} parent=1 // pred_check_branch
      %64 = sbr.rel (0) target = $region37
    $region36: #{tpu_custom_call.1} parent=1 // pred_region
      %65 = dma.done [#allocation6], 4096
    $region37: #{tpu_custom_call.1} parent=1 // pred_fallthru
      _
    %v67 = vld [vmem:[#allocation2] sm:$0x1]
    %v68 = vld [vmem:[#allocation5] sm:$0xff]
    %v69 = vld [vmem:[#allocation5 + $0x8] sm:$0xff]
    %v70 = vld [vmem:[#allocation5 + $0x10] sm:$0xff]
    %v71 = vld [vmem:[#allocation5 + $0x18] sm:$0xff]
    %v72 = vld [vmem:[#allocation5 + $0x20] sm:$0xff]
    %v73 = vld [vmem:[#allocation5 + $0x28] sm:$0xff]
    %v74 = vld [vmem:[#allocation5 + $0x30] sm:$0xff]
    %v75 = vld [vmem:[#allocation5 + $0x38] sm:$0xff]
    %v76 = vld [vmem:[#allocation5 + $0x40] sm:$0xff]
    %v77 = vld [vmem:[#allocation5 + $0x48] sm:$0xff]
    %v78 = vld [vmem:[#allocation5 + $0x50] sm:$0xff]
    %v79 = vld [vmem:[#allocation5 + $0x58] sm:$0xff]
    %v80 = vld [vmem:[#allocation5 + $0x60] sm:$0xff]
    %v81 = vld [vmem:[#allocation5 + $0x68] sm:$0xff]
    %v82 = vld [vmem:[#allocation5 + $0x70] sm:$0xff]
    %v83 = vld [vmem:[#allocation5 + $0x78] sm:$0xff]
    %v84 = vld [vmem:[#allocation5 + $0x80] sm:$0xff]
    %v85 = vld [vmem:[#allocation5 + $0x88] sm:$0xff]
    %v86 = vld [vmem:[#allocation5 + $0x90] sm:$0xff]
    %v87 = vld [vmem:[#allocation5 + $0x98] sm:$0xff]
    %v88 = vld [vmem:[#allocation5 + $0xa0] sm:$0xff]
    %v89 = vld [vmem:[#allocation5 + $0xa8] sm:$0xff]
    %v90 = vld [vmem:[#allocation5 + $0xb0] sm:$0xff]
    %v91 = vld [vmem:[#allocation5 + $0xb8] sm:$0xff]
    %v92 = vld [vmem:[#allocation5 + $0xc0] sm:$0xff]
    %v93 = vld [vmem:[#allocation5 + $0xc8] sm:$0xff]
    %v94 = vld [vmem:[#allocation5 + $0xd0] sm:$0xff]
    %v95 = vld [vmem:[#allocation5 + $0xd8] sm:$0xff]
    %v96 = vld [vmem:[#allocation5 + $0xe0] sm:$0xff]
    %v97 = vld [vmem:[#allocation5 + $0xe8] sm:$0xff]
    %v98 = vld [vmem:[#allocation5 + $0xf0] sm:$0xff]
    %v99 = vld [vmem:[#allocation5 + $0xf8] sm:$0xff]
    %v100 = vld [vmem:[%s1] sm:$0x1]
    %v101 = vld [vmem:[#allocation7] sm:$0xff]
    %v102 = vld [vmem:[#allocation7 + $0x8] sm:$0xff]
    %v103 = vld [vmem:[#allocation7 + $0x10] sm:$0xff]
    %v104 = vld [vmem:[#allocation7 + $0x18] sm:$0xff]
    %v105 = vld [vmem:[#allocation7 + $0x20] sm:$0xff]
    %v106 = vld [vmem:[#allocation7 + $0x28] sm:$0xff]
    %v107 = vld [vmem:[#allocation7 + $0x30] sm:$0xff]
    %v108 = vld [vmem:[#allocation7 + $0x38] sm:$0xff]
    %v109 = vld [vmem:[#allocation7 + $0x40] sm:$0xff]
    %v110 = vld [vmem:[#allocation7 + $0x48] sm:$0xff]
    %v111 = vld [vmem:[#allocation7 + $0x50] sm:$0xff]
    %v112 = vld [vmem:[#allocation7 + $0x58] sm:$0xff]
    %v113 = vld [vmem:[#allocation7 + $0x60] sm:$0xff]
    %v114 = vld [vmem:[#allocation7 + $0x68] sm:$0xff]
    %v115 = vld [vmem:[#allocation7 + $0x70] sm:$0xff]
    %v116 = vld [vmem:[#allocation7 + $0x78] sm:$0xff]
    %v117 = vld [vmem:[#allocation7 + $0x80] sm:$0xff]
    %v118 = vld [vmem:[#allocation7 + $0x88] sm:$0xff]
    %v119 = vld [vmem:[#allocation7 + $0x90] sm:$0xff]
    %v120 = vld [vmem:[#allocation7 + $0x98] sm:$0xff]
    %v121 = vld [vmem:[#allocation7 + $0xa0] sm:$0xff]
    %v122 = vld [vmem:[#allocation7 + $0xa8] sm:$0xff]
    %v123 = vld [vmem:[#allocation7 + $0xb0] sm:$0xff]
    %v124 = vld [vmem:[#allocation7 + $0xb8] sm:$0xff]
    %v125 = vld [vmem:[#allocation7 + $0xc0] sm:$0xff]
    %v126 = vld [vmem:[#allocation7 + $0xc8] sm:$0xff]
    %v127 = vld [vmem:[#allocation7 + $0xd0] sm:$0xff]
    %v128 = vld [vmem:[#allocation7 + $0xd8] sm:$0xff]
    %v129 = vld [vmem:[#allocation7 + $0xe0] sm:$0xff]
    %v130 = vld [vmem:[#allocation7 + $0xe8] sm:$0xff]
    %v131 = vld [vmem:[#allocation7 + $0xf0] sm:$0xff]
    %v132 = vld [vmem:[#allocation7 + $0xf8] sm:$0xff]
    %v165 = vunpack.c.l.b16 %v101
    %v166 = vunpack.c.h.b16 %v101
    %v167 = vunpack.c.l.b16 %v102
    %v168 = vunpack.c.h.b16 %v102
    %v169 = vunpack.c.l.b16 %v103
    %v170 = vunpack.c.h.b16 %v103
    %v171 = vunpack.c.l.b16 %v104
    %v172 = vunpack.c.h.b16 %v104
    %v173 = vunpack.c.l.b16 %v105
    %v174 = vunpack.c.h.b16 %v105
    %v175 = vunpack.c.l.b16 %v106
    %v176 = vunpack.c.h.b16 %v106
    %v177 = vunpack.c.l.b16 %v107
    %v178 = vunpack.c.h.b16 %v107
    %v179 = vunpack.c.l.b16 %v108
    %v180 = vunpack.c.h.b16 %v108
    %v181 = vunpack.c.l.b16 %v109
    %v182 = vunpack.c.h.b16 %v109
    %v183 = vunpack.c.l.b16 %v110
    %v184 = vunpack.c.h.b16 %v110
    %v185 = vunpack.c.l.b16 %v111
    %v186 = vunpack.c.h.b16 %v111
    %v187 = vunpack.c.l.b16 %v112
    %v188 = vunpack.c.h.b16 %v112
    %v189 = vunpack.c.l.b16 %v113
    %v190 = vunpack.c.h.b16 %v113
    %v191 = vunpack.c.l.b16 %v114
    %v192 = vunpack.c.h.b16 %v114
    %v193 = vunpack.c.l.b16 %v115
    %v194 = vunpack.c.h.b16 %v115
    %v195 = vunpack.c.l.b16 %v116
    %v196 = vunpack.c.h.b16 %v116
    %v197 = vunpack.c.l.b16 %v117
    %v198 = vunpack.c.h.b16 %v117
    %v199 = vunpack.c.l.b16 %v118
    %v200 = vunpack.c.h.b16 %v118
    %v201 = vunpack.c.l.b16 %v119
    %v202 = vunpack.c.h.b16 %v119
    %v203 = vunpack.c.l.b16 %v120
    %v204 = vunpack.c.h.b16 %v120
    %v205 = vunpack.c.l.b16 %v121
    %v206 = vunpack.c.h.b16 %v121
    %v207 = vunpack.c.l.b16 %v122
    %v208 = vunpack.c.h.b16 %v122
    %v209 = vunpack.c.l.b16 %v123
    %v210 = vunpack.c.h.b16 %v123
    %v211 = vunpack.c.l.b16 %v124
    %v212 = vunpack.c.h.b16 %v124
    %v213 = vunpack.c.l.b16 %v125
    %v214 = vunpack.c.h.b16 %v125
    %v215 = vunpack.c.l.b16 %v126
    %v216 = vunpack.c.h.b16 %v126
    %v217 = vunpack.c.l.b16 %v127
    %v218 = vunpack.c.h.b16 %v127
    %v219 = vunpack.c.l.b16 %v128
    %v220 = vunpack.c.h.b16 %v128
    %v221 = vunpack.c.l.b16 %v129
    %v222 = vunpack.c.h.b16 %v129
    %v223 = vunpack.c.l.b16 %v130
    %v224 = vunpack.c.h.b16 %v130
    %v225 = vunpack.c.l.b16 %v131
    %v226 = vunpack.c.h.b16 %v131
    %v227 = vunpack.c.l.b16 %v132
    %v228 = vunpack.c.h.b16 %v132
    %v229 = vpack.c.b16 %v169, %v165
    %v230 = vpack.c.b16 %v170, %v166
    %v231 = vpack.c.b16 %v171, %v167
    %v232 = vpack.c.b16 %v172, %v168
    %v233 = vpack.c.b16 %v177, %v173
    %v234 = vpack.c.b16 %v178, %v174
    %v235 = vpack.c.b16 %v179, %v175
    %v236 = vpack.c.b16 %v180, %v176
    %v237 = vpack.c.b16 %v185, %v181
    %v238 = vpack.c.b16 %v186, %v182
    %v239 = vpack.c.b16 %v187, %v183
    %v240 = vpack.c.b16 %v188, %v184
    %v241 = vpack.c.b16 %v193, %v189
    %v242 = vpack.c.b16 %v194, %v190
    %v243 = vpack.c.b16 %v195, %v191
    %v244 = vpack.c.b16 %v196, %v192
    %v245 = vpack.c.b16 %v201, %v197
    %v246 = vpack.c.b16 %v202, %v198
    %v247 = vpack.c.b16 %v203, %v199
    %v248 = vpack.c.b16 %v204, %v200
    %v249 = vpack.c.b16 %v209, %v205
    %v250 = vpack.c.b16 %v210, %v206
    %v251 = vpack.c.b16 %v211, %v207
    %v252 = vpack.c.b16 %v212, %v208
    %v253 = vpack.c.b16 %v217, %v213
    %v254 = vpack.c.b16 %v218, %v214
    %v255 = vpack.c.b16 %v219, %v215
    %v256 = vpack.c.b16 %v220, %v216
    %v257 = vpack.c.b16 %v225, %v221
    %v258 = vpack.c.b16 %v226, %v222
    %v259 = vpack.c.b16 %v227, %v223
    %v260 = vpack.c.b16 %v228, %v224
    %293 = vmatprep.subr.bf16.mxu0 %v258
    %294 = vmatpush1.bf16.msra.mxu0 %v257
    %295 = vmatprep.subr.bf16.mxu0 %v254
    %296 = vmatpush1.bf16.msra.mxu0 %v253
    %297 = vmatprep.subr.bf16.mxu0 %v250
    %298 = vmatpush1.bf16.msra.mxu0 %v249
    %299 = vmatprep.subr.bf16.mxu0 %v246
    %300 = vmatpush1.bf16.msra.mxu0 %v245
    %301 = vmatprep.subr.bf16.mxu0 %v242
    %302 = vmatpush1.bf16.msra.mxu0 %v241
    %303 = vmatprep.subr.bf16.mxu0 %v238
    %304 = vmatpush1.bf16.msra.mxu0 %v237
    %305 = vmatprep.subr.bf16.mxu0 %v234
    %306 = vmatpush1.bf16.msra.mxu0 %v233
    %307 = vmatprep.subr.bf16.mxu0 %v230
    %308 = vmatpush1.bf16.msra.mxu0 %v229
    %309 = vmatprep.subr.bf16.mxu0 0
    %310 = vmatpush2.bf16.msra.mxu0 0
    %311 = vmatprep.subr.bf16.mxu0 0
    %312 = vmatpush2.bf16.msra.mxu0 0
    %313 = vmatprep.subr.bf16.mxu0 0
    %314 = vmatpush2.bf16.msra.mxu0 0
    %315 = vmatprep.subr.bf16.mxu0 0
    %316 = vmatpush2.bf16.msra.mxu0 0
    %317 = vmatprep.subr.bf16.mxu0 0
    %318 = vmatpush2.bf16.msra.mxu0 0
    %319 = vmatprep.subr.bf16.mxu0 0
    %320 = vmatpush2.bf16.msra.mxu0 0
    %321 = vmatprep.subr.bf16.mxu0 0
    %322 = vmatpush2.bf16.msra.mxu0 0
    %323 = vmatprep.subr.bf16.mxu0 0
    %324 = vmatpush2.bf16.msra.mxu0 0
    %325 = vmatprep.mubr.bf16.mxu0 0
    %326 = vmatmul.mubr.bf16.gmra.mxu0 %v100
    %v327 = vpop.f32.mrf.mxu0
    %v328 = vadd.f32 0.0, %v327
    %v329 = vpop.f32.mrf.mxu0
    %v330 = vadd.f32 0.0, %v329
    %v331 = vpop.f32.mrf.mxu0
    %v332 = vpop.f32.mrf.mxu0
    %333 = vdwg.mxu0
    %334 = vmatprep.subr.bf16.mxu0 %v260
    %335 = vmatpush1.bf16.msra.mxu0 %v259
    %336 = vmatprep.subr.bf16.mxu0 %v256
    %337 = vmatpush1.bf16.msra.mxu0 %v255
    %338 = vmatprep.subr.bf16.mxu0 %v252
    %339 = vmatpush1.bf16.msra.mxu0 %v251
    %340 = vmatprep.subr.bf16.mxu0 %v248
    %341 = vmatpush1.bf16.msra.mxu0 %v247
    %342 = vmatprep.subr.bf16.mxu0 %v244
    %343 = vmatpush1.bf16.msra.mxu0 %v243
    %344 = vmatprep.subr.bf16.mxu0 %v240
    %345 = vmatpush1.bf16.msra.mxu0 %v239
    %346 = vmatprep.subr.bf16.mxu0 %v236
    %347 = vmatpush1.bf16.msra.mxu0 %v235
    %348 = vmatprep.subr.bf16.mxu0 %v232
    %349 = vmatpush1.bf16.msra.mxu0 %v231
    %350 = vmatprep.subr.bf16.mxu0 0
    %351 = vmatpush2.bf16.msra.mxu0 0
    %352 = vmatprep.subr.bf16.mxu0 0
    %353 = vmatpush2.bf16.msra.mxu0 0
    %354 = vmatprep.subr.bf16.mxu0 0
    %355 = vmatpush2.bf16.msra.mxu0 0
    %356 = vmatprep.subr.bf16.mxu0 0
    %357 = vmatpush2.bf16.msra.mxu0 0
    %358 = vmatprep.subr.bf16.mxu0 0
    %359 = vmatpush2.bf16.msra.mxu0 0
    %360 = vmatprep.subr.bf16.mxu0 0
    %361 = vmatpush2.bf16.msra.mxu0 0
    %362 = vmatprep.subr.bf16.mxu0 0
    %363 = vmatpush2.bf16.msra.mxu0 0
    %364 = vmatprep.subr.bf16.mxu0 0
    %365 = vmatpush2.bf16.msra.mxu0 0
    %366 = vmatprep.mubr.bf16.mxu0 0
    %367 = vmatmul.mubr.bf16.gmra.mxu0 %v100
    %v368 = vpop.f32.mrf.mxu0
    %v369 = vadd.f32 0.0, %v368
    %v370 = vpop.f32.mrf.mxu0
    %v371 = vadd.f32 0.0, %v370
    %v372 = vpop.f32.mrf.mxu0
    %v373 = vpop.f32.mrf.mxu0
    %374 = vdwg.mxu0
    %v407 = vunpack.c.l.b16 %v68
    %v408 = vunpack.c.h.b16 %v68
    %v409 = vunpack.c.l.b16 %v69
    %v410 = vunpack.c.h.b16 %v69
    %v411 = vunpack.c.l.b16 %v70
    %v412 = vunpack.c.h.b16 %v70
    %v413 = vunpack.c.l.b16 %v71
    %v414 = vunpack.c.h.b16 %v71
    %v415 = vunpack.c.l.b16 %v72
    %v416 = vunpack.c.h.b16 %v72
    %v417 = vunpack.c.l.b16 %v73
    %v418 = vunpack.c.h.b16 %v73
    %v419 = vunpack.c.l.b16 %v74
    %v420 = vunpack.c.h.b16 %v74
    %v421 = vunpack.c.l.b16 %v75
    %v422 = vunpack.c.h.b16 %v75
    %v423 = vunpack.c.l.b16 %v76
    %v424 = vunpack.c.h.b16 %v76
    %v425 = vunpack.c.l.b16 %v77
    %v426 = vunpack.c.h.b16 %v77
    %v427 = vunpack.c.l.b16 %v78
    %v428 = vunpack.c.h.b16 %v78
    %v429 = vunpack.c.l.b16 %v79
    %v430 = vunpack.c.h.b16 %v79
    %v431 = vunpack.c.l.b16 %v80
    %v432 = vunpack.c.h.b16 %v80
    %v433 = vunpack.c.l.b16 %v81
    %v434 = vunpack.c.h.b16 %v81
    %v435 = vunpack.c.l.b16 %v82
    %v436 = vunpack.c.h.b16 %v82
    %v437 = vunpack.c.l.b16 %v83
    %v438 = vunpack.c.h.b16 %v83
    %v439 = vunpack.c.l.b16 %v84
    %v440 = vunpack.c.h.b16 %v84
    %v441 = vunpack.c.l.b16 %v85
    %v442 = vunpack.c.h.b16 %v85
    %v443 = vunpack.c.l.b16 %v86
    %v444 = vunpack.c.h.b16 %v86
    %v445 = vunpack.c.l.b16 %v87
    %v446 = vunpack.c.h.b16 %v87
    %v447 = vunpack.c.l.b16 %v88
    %v448 = vunpack.c.h.b16 %v88
    %v449 = vunpack.c.l.b16 %v89
    %v450 = vunpack.c.h.b16 %v89
    %v451 = vunpack.c.l.b16 %v90
    %v452 = vunpack.c.h.b16 %v90
    %v453 = vunpack.c.l.b16 %v91
    %v454 = vunpack.c.h.b16 %v91
    %v455 = vunpack.c.l.b16 %v92
    %v456 = vunpack.c.h.b16 %v92
    %v457 = vunpack.c.l.b16 %v93
    %v458 = vunpack.c.h.b16 %v93
    %v459 = vunpack.c.l.b16 %v94
    %v460 = vunpack.c.h.b16 %v94
    %v461 = vunpack.c.l.b16 %v95
    %v462 = vunpack.c.h.b16 %v95
    %v463 = vunpack.c.l.b16 %v96
    %v464 = vunpack.c.h.b16 %v96
    %v465 = vunpack.c.l.b16 %v97
    %v466 = vunpack.c.h.b16 %v97
    %v467 = vunpack.c.l.b16 %v98
    %v468 = vunpack.c.h.b16 %v98
    %v469 = vunpack.c.l.b16 %v99
    %v470 = vunpack.c.h.b16 %v99
    %v471 = vpack.c.b16 %v411, %v407
    %v472 = vpack.c.b16 %v412, %v408
    %v473 = vpack.c.b16 %v413, %v409
    %v474 = vpack.c.b16 %v414, %v410
    %v475 = vpack.c.b16 %v419, %v415
    %v476 = vpack.c.b16 %v420, %v416
    %v477 = vpack.c.b16 %v421, %v417
    %v478 = vpack.c.b16 %v422, %v418
    %v479 = vpack.c.b16 %v427, %v423
    %v480 = vpack.c.b16 %v428, %v424
    %v481 = vpack.c.b16 %v429, %v425
    %v482 = vpack.c.b16 %v430, %v426
    %v483 = vpack.c.b16 %v435, %v431
    %v484 = vpack.c.b16 %v436, %v432
    %v485 = vpack.c.b16 %v437, %v433
    %v486 = vpack.c.b16 %v438, %v434
    %v487 = vpack.c.b16 %v443, %v439
    %v488 = vpack.c.b16 %v444, %v440
    %v489 = vpack.c.b16 %v445, %v441
    %v490 = vpack.c.b16 %v446, %v442
    %v491 = vpack.c.b16 %v451, %v447
    %v492 = vpack.c.b16 %v452, %v448
    %v493 = vpack.c.b16 %v453, %v449
    %v494 = vpack.c.b16 %v454, %v450
    %v495 = vpack.c.b16 %v459, %v455
    %v496 = vpack.c.b16 %v460, %v456
    %v497 = vpack.c.b16 %v461, %v457
    %v498 = vpack.c.b16 %v462, %v458
    %v499 = vpack.c.b16 %v467, %v463
    %v500 = vpack.c.b16 %v468, %v464
    %v501 = vpack.c.b16 %v469, %v465
    %v502 = vpack.c.b16 %v470, %v466
    %535 = vmatprep.subr.bf16.mxu0 %v500
    %536 = vmatpush1.bf16.msra.mxu0 %v499
    %537 = vmatprep.subr.bf16.mxu0 %v496
    %538 = vmatpush1.bf16.msra.mxu0 %v495
    %539 = vmatprep.subr.bf16.mxu0 %v492
    %540 = vmatpush1.bf16.msra.mxu0 %v491
    %541 = vmatprep.subr.bf16.mxu0 %v488
    %542 = vmatpush1.bf16.msra.mxu0 %v487
    %543 = vmatprep.subr.bf16.mxu0 %v484
    %544 = vmatpush1.bf16.msra.mxu0 %v483
    %545 = vmatprep.subr.bf16.mxu0 %v480
    %546 = vmatpush1.bf16.msra.mxu0 %v479
    %547 = vmatprep.subr.bf16.mxu0 %v476
    %548 = vmatpush1.bf16.msra.mxu0 %v475
    %549 = vmatprep.subr.bf16.mxu0 %v472
    %550 = vmatpush1.bf16.msra.mxu0 %v471
    %551 = vmatprep.subr.bf16.mxu0 0
    %552 = vmatpush2.bf16.msra.mxu0 0
    %553 = vmatprep.subr.bf16.mxu0 0
    %554 = vmatpush2.bf16.msra.mxu0 0
    %555 = vmatprep.subr.bf16.mxu0 0
    %556 = vmatpush2.bf16.msra.mxu0 0
    %557 = vmatprep.subr.bf16.mxu0 0
    %558 = vmatpush2.bf16.msra.mxu0 0
    %559 = vmatprep.subr.bf16.mxu0 0
    %560 = vmatpush2.bf16.msra.mxu0 0
    %561 = vmatprep.subr.bf16.mxu0 0
    %562 = vmatpush2.bf16.msra.mxu0 0
    %563 = vmatprep.subr.bf16.mxu0 0
    %564 = vmatpush2.bf16.msra.mxu0 0
    %565 = vmatprep.subr.bf16.mxu0 0
    %566 = vmatpush2.bf16.msra.mxu0 0
    %567 = vmatprep.mubr.bf16.mxu0 0
    %568 = vmatmul.mubr.bf16.gmra.mxu0 %v67
    %v569 = vpop.f32.mrf.mxu0
    %v570 = vadd.f32 %v328, %v569
    %v571 = vpop.f32.mrf.mxu0
    %v572 = vadd.f32 %v330, %v571
    %v573 = vpop.f32.mrf.mxu0
    %v574 = vpop.f32.mrf.mxu0
    %575 = vdwg.mxu0
    %576 = vmatprep.subr.bf16.mxu0 %v502
    %577 = vmatpush1.bf16.msra.mxu0 %v501
    %578 = vmatprep.subr.bf16.mxu0 %v498
    %579 = vmatpush1.bf16.msra.mxu0 %v497
    %580 = vmatprep.subr.bf16.mxu0 %v494
    %581 = vmatpush1.bf16.msra.mxu0 %v493
    %582 = vmatprep.subr.bf16.mxu0 %v490
    %583 = vmatpush1.bf16.msra.mxu0 %v489
    %584 = vmatprep.subr.bf16.mxu0 %v486
    %585 = vmatpush1.bf16.msra.mxu0 %v485
    %586 = vmatprep.subr.bf16.mxu0 %v482
    %587 = vmatpush1.bf16.msra.mxu0 %v481
    %588 = vmatprep.subr.bf16.mxu0 %v478
    %589 = vmatpush1.bf16.msra.mxu0 %v477
    %590 = vmatprep.subr.bf16.mxu0 %v474
    %591 = vmatpush1.bf16.msra.mxu0 %v473
    %592 = vmatprep.subr.bf16.mxu0 0
    %593 = vmatpush2.bf16.msra.mxu0 0
    %594 = vmatprep.subr.bf16.mxu0 0
    %595 = vmatpush2.bf16.msra.mxu0 0
    %596 = vmatprep.subr.bf16.mxu0 0
    %597 = vmatpush2.bf16.msra.mxu0 0
    %598 = vmatprep.subr.bf16.mxu0 0
    %599 = vmatpush2.bf16.msra.mxu0 0
    %600 = vmatprep.subr.bf16.mxu0 0
    %601 = vmatpush2.bf16.msra.mxu0 0
    %602 = vmatprep.subr.bf16.mxu0 0
    %603 = vmatpush2.bf16.msra.mxu0 0
    %604 = vmatprep.subr.bf16.mxu0 0
    %605 = vmatpush2.bf16.msra.mxu0 0
    %606 = vmatprep.subr.bf16.mxu0 0
    %607 = vmatpush2.bf16.msra.mxu0 0
    %608 = vmatprep.mubr.bf16.mxu0 0
    %609 = vmatmul.mubr.bf16.gmra.mxu0 %v67
    %v610 = vpop.f32.mrf.mxu0
    %v611 = vadd.f32 %v369, %v610
    %v612 = vpop.f32.mrf.mxu0
    %v613 = vadd.f32 %v371, %v612
    %v614 = vpop.f32.mrf.mxu0
    %v615 = vpop.f32.mrf.mxu0
    %616 = vdwg.mxu0
    %v617 = vld [vmem:[%s5] sm:$0xf]
    %v619 = vlaneseq
    %v620 = vshrl.u32 %v619, 7
    %v621 = vsub.s32 0, %v620
    %v622 = vrot.slane %v617, %v621
    %v623 = vlaneseq
    %v624 = vshrl.u32 %v623, 7
    %v625 = vsub.s32 1, %v624
    %v626 = vrot.slane %v617, %v625
    %v627 = vlaneseq
    %v628 = vshrl.u32 %v627, 7
    %v629 = vsub.s32 2, %v628
    %v630 = vrot.slane %v617, %v629
    %v631 = vlaneseq
    %v632 = vshrl.u32 %v631, 7
    %v633 = vsub.s32 3, %v632
    %v634 = vrot.slane %v617, %v633
    %v639 = vadd.f32 %v570, %v622
    %v640 = vadd.f32 %v572, %v626
    %v641 = vadd.f32 %v611, %v630
    %v642 = vadd.f32 %v613, %v634
    %v643 = vxor.u32 %v639, 2147483648
    %v644 = vmul.f32 %v643, 1.442695
    %v645 = vpow.pop %v644
    %v646 = vadd.f32 %v645, 1.0
    %v647 = vrcp.pop %v646
    %v648 = vmul.f32 1.0, %v647
    %v649 = vxor.u32 %v640, 2147483648
    %v650 = vmul.f32 %v649, 1.442695
    %v651 = vpow.pop %v650
    %v652 = vadd.f32 %v651, 1.0
    %v653 = vrcp.pop %v652
    %v654 = vmul.f32 1.0, %v653
    %v655 = vtanh.pop %v641
    %v656 = vxor.u32 %v642, 2147483648
    %v657 = vmul.f32 %v656, 1.442695
    %v658 = vpow.pop %v657
    %v659 = vadd.f32 %v658, 1.0
    %v660 = vrcp.pop %v659
    %v661 = vmul.f32 1.0, %v660
    %v662 = vld [vmem:[%s2] sm:$0x3]
    %v663 = vmul.f32 %v654, %v662
    %v664 = vmul.f32 %v648, %v655
    %v665 = vadd.f32 %v663, %v664
    %v666 = vtanh.pop %v665
    %v667 = vmul.f32 %v661, %v666
    %668 = vst [vmem:[#allocation8] sm:$0x3] %v667
    %669 = vst [vmem:[#allocation9] sm:$0x3] %v665
    // Predicated region
    $region38: #{tpu_custom_call.1} parent=1 // pred_check
      _
    $region39: #{tpu_custom_call.1} parent=1 // pred_check_branch
      %671 = sbr.rel (0) target = $region41
    $region40: #{tpu_custom_call.1} parent=1 // pred_region
      %s673 = ssub.s32 32, 32
      %674 = vsyncadd [#allocation4], %s673
      %s676 = sshll.u32 [#allocation8], 4
      %s677 = int_to_ptr.vmem [resolvable:$true] %s676
      %679 = dma.vmem_to_hbm [thread:$0]  %s677, 32, %s6, [#allocation4]
    $region41: #{tpu_custom_call.1} parent=1 // pred_fallthru
      _
    // Predicated region
    $region42: #{tpu_custom_call.1} parent=1 // pred_check
      _
    $region43: #{tpu_custom_call.1} parent=1 // pred_check_branch
      %681 = sbr.rel (0) target = $region45
    $region44: #{tpu_custom_call.1} parent=1 // pred_region
      %s683 = ssub.s32 32, 32
      %684 = vsyncadd [#allocation10], %s683
      %s686 = sshll.u32 [#allocation9], 4
      %s687 = int_to_ptr.vmem [resolvable:$true] %s686
      %689 = dma.vmem_to_hbm [thread:$0]  %s687, 32, %s7, [#allocation10]
    $region45: #{tpu_custom_call.1} parent=1 // pred_fallthru
      _
    // Predicated region
    $region46: #{tpu_custom_call.1} parent=1 // pred_check
      _
    $region47: #{tpu_custom_call.1} parent=1 // pred_check_branch
      %691 = sbr.rel (0) target = $region49
    $region48: #{tpu_custom_call.1} parent=1 // pred_region
      %692 = dma.done [#allocation4], 32
    $region49: #{tpu_custom_call.1} parent=1 // pred_fallthru
      _
    // Predicated region
    $region50: #{tpu_custom_call.1} parent=1 // pred_check
      _
    $region51: #{tpu_custom_call.1} parent=1 // pred_check_branch
      %694 = sbr.rel (0) target = $region53
    $region52: #{tpu_custom_call.1} parent=1 // pred_region
      %695 = dma.done [#allocation10], 32
    $region53: #{tpu_custom_call.1} parent=1 // pred_fallthru
      _
    %696 = vsyncpa [#allocation3], 1
    %697 = vsyncpa [#allocation6], 1
    %698 = vsyncpa [#allocation4], 1
    %699 = vsyncpa [#allocation10], 1

</llo_original>
